<compile_context>
chip_gen: v5e
topology: v5e:2x2
jax: 0.10.0
libtpu: 0.0.40
codegen_flags: <defaults>
</compile_context>

<pallas_src>
import functools

import jax
import jax.numpy as jnp
import numpy as np
from jax.experimental import pallas as pl
from jax.experimental.pallas import tpu as pltpu

LANE = 128
BF16_SUBLANE = 16            # bf16 packs 16 rows per vreg


def _round_up(n, m):
    return ((n + m - 1) // m) * m


# ---------------------------------------------------------------------------
# Fused kernel: the full GatedDense->BN(->Dropout) stack in one invocation.
# ---------------------------------------------------------------------------
def _make_fused_mlp_kernel(n_layers, half_widths):
    """half_widths[l] = padded per-branch width of layer l (split point)."""

    def kernel(x_ref, *refs):
        o_ref = refs[-1]
        layer_refs = refs[:-1]                 # 2 refs/layer: W(bf16), bias|shift(f32)
        act = x_ref[...].astype(jnp.float32)   # stays on-chip across layers
        for l in range(n_layers):              # unrolled at trace time
            w_ref = layer_refs[2 * l + 0]      # (in_pad, 2*out_pad) bf16  [Wh*s | Wg]
            bs_ref = layer_refs[2 * l + 1]     # (2, 2*out_pad) f32 row0=[bh*s|bg], row1=[shift|0]
            half = half_widths[l]
            bs = bs_ref[...]
            # bf16 MXU operands, f32 accumulation; bias add in f32.
            y = jnp.dot(act.astype(jnp.bfloat16), w_ref[...],
                        preferred_element_type=jnp.float32) + bs[0:1, :]
            h = y[:, :half]
            g = y[:, half:]
            # sigmoid via EUP exp + EUP approximate reciprocal.
            sig = pl.reciprocal(1.0 + jnp.exp(-g), approx=True)
            act = h * sig + bs[1:2, :half]
        o_ref[...] = act.astype(o_ref.dtype)

    return kernel


# ---------------------------------------------------------------------------
# Fallback per-layer kernel (K-tiled reduction) for the VMEM-guard path.
# ---------------------------------------------------------------------------
def _layer_kernel(x_ref, w_ref, bs_ref, o_ref, acc_ref, *, half):
    k = pl.program_id(1)

    @pl.when(k == 0)
    def _():
        acc_ref[...] = jnp.zeros_like(acc_ref)

    acc_ref[...] += jnp.dot(x_ref[...].astype(jnp.bfloat16), w_ref[...],
                            preferred_element_type=jnp.float32)

    @pl.when(k == pl.num_programs(1) - 1)
    def _():
        bs = bs_ref[...]
        y = acc_ref[...] + bs[0:1, :]
        h = y[:, :half]
        g = y[:, half:]
        sig = pl.reciprocal(1.0 + jnp.exp(-g), approx=True)
        o_ref[...] = (h * sig + bs[1:2, :half]).astype(o_ref.dtype)


# ---------------------------------------------------------------------------
# Parameter prep: fold BN scale, fuse Wh|Wg (bf16), merge bias+shift rows,
# pad feature dims to 128 lanes.
# ---------------------------------------------------------------------------
def prepare_fused_params(params):
    """params: list of (wh, bh, wg, bg, scale, shift) per layer (f32, weights
    stored (in_features, out_features)).

    Returns (flat list [W0, bs0, W1, bs1, ...], half_widths tuple)."""
    fused, half_widths = [], []
    prev_pad = None
    for l, (wh, bh, wg, bg, scale, shift) in enumerate(params):
        in_s, out_s = wh.shape
        in_pad = _round_up(in_s, LANE) if l == 0 else prev_pad
        out_pad = _round_up(out_s, LANE)

        # Fold eval-mode BN scale into the h branch (exact modulo rounding).
        wh_s = (wh * scale).astype(jnp.float32)
        bh_s = (bh * scale).astype(jnp.float32)

        w = jnp.zeros((in_pad, 2 * out_pad), jnp.float32)
        w = w.at[:in_s, :out_s].set(wh_s)
        w = w.at[:in_s, out_pad:out_pad + out_s].set(wg)

        bs = jnp.zeros((2, 2 * out_pad), jnp.float32)
        bs = bs.at[0, :out_s].set(bh_s[0])
        bs = bs.at[0, out_pad:out_pad + out_s].set(bg[0])
        bs = bs.at[1, :out_s].set(shift[0])

        fused.extend([w.astype(jnp.bfloat16), bs])   # MXU operands in bf16
        half_widths.append(out_pad)
        prev_pad = out_pad
    return fused, tuple(half_widths)


# ---------------------------------------------------------------------------
# VMEM budgeting helpers.
# ---------------------------------------------------------------------------
def _vmem_capacity_bytes():
    try:
        info = pltpu.get_tpu_info()
        cap = int(getattr(info, "vmem_capacity_bytes", 0))
        if cap > 0:
            return cap
    except Exception:
        pass
    return 64 * 1024 * 1024   # conservative default (v7x per-TensorCore VMEM)


def _fused_vmem_need(fused, bt, in_pad, out_pad):
    need = 0
    for a in fused:           # resident weights / bias rows, single-buffered
        sub = BF16_SUBLANE if a.dtype == jnp.bfloat16 else 8
        need += _round_up(a.shape[0], sub) * a.shape[1] * a.dtype.itemsize
    # double-buffered activation input/output tiles (f32)
    need += 2 * bt * (in_pad + out_pad) * 4
    # in-flight per-layer activations / MXU output staging (generous margin)
    max_width = max(a.shape[1] for a in fused)
    need += 3 * bt * max(in_pad, max_width) * 4
    return need


def _choose_bt(B):
    if B < 256:
        return _round_up(max(B, 1), BF16_SUBLANE)   # single tile, bf16-aligned
    if B < 512:
        return 128     # >= 2 batch tiles so the parallel axis fills both v7x TCs
    return 256         # full-height tiles for the 256-row MXU on v6e/v7x


# ---------------------------------------------------------------------------
# Fallback path: per-layer pallas_calls with a K-tiled ("arbitrary") axis.
# ---------------------------------------------------------------------------
def _forward_layered(x_p, fused, half_widths, bt, budget):
    n_layers = len(half_widths)
    act = x_p
    B_pad = act.shape[0]
    for l in range(n_layers):
        w, bs = fused[2 * l], fused[2 * l + 1]
        in_pad, two_out = w.shape
        out_pad = half_widths[l]
        # largest K tile (multiple of 128 dividing in_pad) that fits the budget
        num_chunks = in_pad // LANE
        tk = LANE
        for div in range(1, num_chunks + 1):
            if num_chunks % div:
                continue
            cand = in_pad // div
            est = (2 * cand * two_out * 2      # double-buffered bf16 weight tile
                   + 2 * bt * cand * 4         # double-buffered activation tile
                   + bt * two_out * 4          # f32 accumulator scratch
                   + 2 * bt * out_pad * 4)     # double-buffered output tile
            if est <= budget:
                tk = cand
                break
        grid = (B_pad // bt, in_pad // tk)
        act = pl.pallas_call(
            functools.partial(_layer_kernel, half=out_pad),
            grid=grid,
            in_specs=[
                pl.BlockSpec((bt, tk), lambda i, k: (i, k)),
                pl.BlockSpec((tk, two_out), lambda i, k: (k, 0)),
                pl.BlockSpec(bs.shape, lambda i, k: (0, 0)),
            ],
            out_specs=pl.BlockSpec((bt, out_pad), lambda i, k: (i, 0)),
            out_shape=jax.ShapeDtypeStruct((B_pad, out_pad), jnp.float32),
            scratch_shapes=[pltpu.VMEM((bt, two_out), jnp.float32)],
            compiler_params=pltpu.CompilerParams(
                dimension_semantics=("parallel", "arbitrary"),
                vmem_limit_bytes=int(budget)),
        )(act, w, bs)
    return act


# ---------------------------------------------------------------------------
# Wrapper: one pallas_call for the whole MLP (with VMEM-guard fallback).
# ---------------------------------------------------------------------------
def gated_mlp_forward(x_nchw, params, *, force_fallback=False):
    """GatedMLP.forward (eval mode): flatten to (B, -1), run the fused stack."""
    x = x_nchw.reshape(x_nchw.shape[0], -1).astype(jnp.float32)
    B, in_size = x.shape

    fused, half_widths = prepare_fused_params(params)
    n_layers = len(params)
    out_size = params[-1][0].shape[1]
    out_pad = half_widths[-1]
    in_pad = fused[0].shape[0]

    bt = _choose_bt(B)
    B_pad = _round_up(B, bt)
    if B_pad != B or in_pad != in_size:
        x_p = jnp.zeros((B_pad, in_pad), jnp.float32).at[:B, :in_size].set(x)
    else:
        x_p = x      # skip the extra HBM round trip when already aligned
    grid = (B_pad // bt,)

    capacity = _vmem_capacity_bytes()
    budget = (capacity * 3) // 4       # leave headroom for compiler scratch
    need = _fused_vmem_need(fused, bt, in_pad, out_pad)

    if force_fallback or need > budget:
        # TODO(synk): a single-call K-tiled variant of layer 0 would avoid the
        # inter-layer HBM round trips; per-layer calls is the simple safe path.
        out_p = _forward_layered(x_p, fused, half_widths, bt, budget)
        return out_p[:B, :out_size]

    # Advisory cost estimate for XLA's scheduler.
    flops = transcendentals = 0
    bytes_accessed = x_p.size * 4 + B_pad * out_pad * 4
    for l in range(n_layers):
        w, bs = fused[2 * l], fused[2 * l + 1]
        flops += 2 * B_pad * w.shape[0] * w.shape[1]
        transcendentals += B_pad * (w.shape[1] // 2)    # sigmoid ~ 1 exp/elem
        bytes_accessed += w.size * 2 + bs.size * 4
    cost = pl.CostEstimate(flops=flops, transcendentals=transcendentals,
                           bytes_accessed=bytes_accessed)

    kernel = _make_fused_mlp_kernel(n_layers, half_widths)
    out_shape = jax.ShapeDtypeStruct((B_pad, out_pad), jnp.float32)
    x_spec = pl.BlockSpec((bt, in_pad), lambda i: (i, 0))
    out_spec = pl.BlockSpec((bt, out_pad), lambda i: (i, 0))
    cparams = pltpu.CompilerParams(
        dimension_semantics=("parallel",),
        vmem_limit_bytes=int(min(budget, capacity - (8 << 20))),
    )

    def _run(single_buffer_weights):
        in_specs = [x_spec]
        for a in fused:
            if single_buffer_weights:
                # constant block index -> resident; no dead second buffer
                in_specs.append(pl.BlockSpec(a.shape, lambda i: (0, 0),
                                             pipeline_mode=pl.Buffered(1)))
            else:
                in_specs.append(pl.BlockSpec(a.shape, lambda i: (0, 0)))
        return pl.pallas_call(
            kernel, grid=grid, in_specs=in_specs, out_specs=out_spec,
            out_shape=out_shape, compiler_params=cparams, cost_estimate=cost,
        )(x_p, *fused)

    try:
        out_p = _run(True)        # resident weights, single-buffered
    except Exception:
        out_p = _run(False)       # safety net: default double-buffering
    return out_p[:B, :out_size]


# ---------------------------------------------------------------------------
# Parameter init (mirrors init_parameters's uniform init + eval-mode BN).
# ---------------------------------------------------------------------------
def init_gated_mlp_params(key, in_size, out_size, hidden_size, n_layers,
                          scale_init=0.05, bn_eps=1e-5):
    params = []
    for l in range(n_layers):
        in_s = in_size if l == 0 else hidden_size
        out_s = out_size if l == n_layers - 1 else hidden_size
        key, k1, k2, k3, k4, k5, k6 = jax.random.split(key, 7)
        u = lambda k, shape: jax.random.uniform(
            k, shape, jnp.float32, -scale_init, scale_init)
        wh, bh = u(k1, (in_s, out_s)), u(k2, (1, out_s))
        wg, bg = u(k3, (in_s, out_s)), u(k4, (1, out_s))
        if l < n_layers - 1:
            gamma, beta = u(k5, (1, out_s)), u(k6, (1, out_s))
            running_mean = jnp.zeros((1, out_s), jnp.float32)
            running_var = jnp.ones((1, out_s), jnp.float32)
            scale = gamma / jnp.sqrt(running_var + bn_eps)
            shift = beta - running_mean * scale
        else:  # last layer has no BatchNorm -> identity affine
            scale = jnp.ones((1, out_s), jnp.float32)
            shift = jnp.zeros((1, out_s), jnp.float32)
        params.append((wh, bh, wg, bg, scale, shift))
    return params


def gated_mlp_reference(x_nchw, params):
    """Pure-JAX f32 reference (unfused, unpadded) for validation."""
    out = x_nchw.reshape(x_nchw.shape[0], -1)
    for (wh, bh, wg, bg, scale, shift) in params:
        h = out @ wh + bh
        g = out @ wg + bg
        out = (h * jax.nn.sigmoid(g)) * scale + shift
    return out


if __name__ == "__main__":
    # Small shapes consistent with the module: NCHW input, in_size = C*H*W.
    B, C, H, W = 8, 4, 8, 8
    in_size = C * H * W          # 256
    hidden_size = 128
    out_size = 64
    n_layers = 4

    key = jax.random.PRNGKey(0)
    key, kx = jax.random.split(key)
    x = jax.random.normal(kx, (B, C, H, W), dtype=jnp.float32)
    params = init_gated_mlp_params(key, in_size, out_size, hidden_size, n_layers)

    ref = jax.block_until_ready(gated_mlp_reference(x, params))

    out = jax.block_until_ready(gated_mlp_forward(x, params))
    assert out.shape == (B, out_size)
    # bf16 MXU operands + approx reciprocal -> relaxed tolerance vs f32 reference.
    np.testing.assert_allclose(np.asarray(out), np.asarray(ref),
                               rtol=2e-2, atol=2e-3)

    # Also exercise the VMEM-guard fallback path (per-layer, K-tiled calls).
    out_fb = jax.block_until_ready(
        gated_mlp_forward(x, params, force_fallback=True))
    np.testing.assert_allclose(np.asarray(out_fb), np.asarray(ref),
                               rtol=2e-2, atol=2e-3)

    print("KERNEL_OK")
</pallas_src>

<mosaic_0001>
module attributes {stable_mosaic.version = 11 : i64} {
  func.func @kernel(%arg0: i32, %arg1: memref<16x256xf32, #tpu.memory_space<vmem>>, %arg2: memref<256x256xbf16, #tpu.memory_space<vmem>>, %arg3: memref<2x256xf32, #tpu.memory_space<vmem>>, %arg4: memref<128x256xbf16, #tpu.memory_space<vmem>>, %arg5: memref<2x256xf32, #tpu.memory_space<vmem>>, %arg6: memref<128x256xbf16, #tpu.memory_space<vmem>>, %arg7: memref<2x256xf32, #tpu.memory_space<vmem>>, %arg8: memref<128x256xbf16, #tpu.memory_space<vmem>>, %arg9: memref<2x256xf32, #tpu.memory_space<vmem>>, %arg10: memref<16x128xf32, #tpu.memory_space<vmem>>) attributes {dimension_semantics = [#tpu.dimension_semantics<parallel>], iteration_bounds = array<i64: 1>, scalar_prefetch = 0 : i64, scratch_operands = 0 : i64, tpu.core_type = #tpu.core_type<tc>, window_params = [{transform_indices = @transform_0, window_bounds = array<i64: 16, 256>}, {pipeline_mode = #tpu.pipeline_mode<synchronous>, transform_indices = @transform_1, window_bounds = array<i64: 256, 256>}, {pipeline_mode = #tpu.pipeline_mode<synchronous>, transform_indices = @transform_2, window_bounds = array<i64: 2, 256>}, {pipeline_mode = #tpu.pipeline_mode<synchronous>, transform_indices = @transform_3, window_bounds = array<i64: 128, 256>}, {pipeline_mode = #tpu.pipeline_mode<synchronous>, transform_indices = @transform_4, window_bounds = array<i64: 2, 256>}, {pipeline_mode = #tpu.pipeline_mode<synchronous>, transform_indices = @transform_5, window_bounds = array<i64: 128, 256>}, {pipeline_mode = #tpu.pipeline_mode<synchronous>, transform_indices = @transform_6, window_bounds = array<i64: 2, 256>}, {pipeline_mode = #tpu.pipeline_mode<synchronous>, transform_indices = @transform_7, window_bounds = array<i64: 128, 256>}, {pipeline_mode = #tpu.pipeline_mode<synchronous>, transform_indices = @transform_8, window_bounds = array<i64: 2, 256>}, {transform_indices = @transform_9, window_bounds = array<i64: 16, 128>}]} {
    %c0 = arith.constant 0 : index
    %c0_0 = arith.constant 0 : index
    %0 = vector.load %arg1[%c0, %c0_0] : memref<16x256xf32, #tpu.memory_space<vmem>>, vector<16x256xf32>
    %c0_1 = arith.constant 0 : index
    %c0_2 = arith.constant 0 : index
    %1 = vector.load %arg3[%c0_1, %c0_2] : memref<2x256xf32, #tpu.memory_space<vmem>>, vector<2x256xf32>
    %2 = arith.truncf %0 : vector<16x256xf32> to vector<16x256xbf16>
    %c0_3 = arith.constant 0 : index
    %c0_4 = arith.constant 0 : index
    %3 = vector.load %arg2[%c0_3, %c0_4] : memref<256x256xbf16, #tpu.memory_space<vmem>>, vector<256x256xbf16>
    %cst = arith.constant dense<0.000000e+00> : vector<16x256xf32>
    %4 = tpu.matmul %2, %3, %cst {dimension_numbers = #tpu.dot_dimension_numbers<[1], [0], [0], [1], [0, 0, 1, 1], [], []>} : vector<16x256xbf16>, vector<256x256xbf16>, vector<16x256xf32> -> vector<16x256xf32>
    %5 = vector.extract_strided_slice %1 {offsets = [0, 0], sizes = [1, 256], strides = [1, 1]} : vector<2x256xf32> to vector<1x256xf32>
    %6 = vector.broadcast %5 : vector<1x256xf32> to vector<16x256xf32>
    %7 = arith.addf %4, %6 : vector<16x256xf32>
    %8 = vector.extract_strided_slice %7 {offsets = [0, 0], sizes = [16, 128], strides = [1, 1]} : vector<16x256xf32> to vector<16x128xf32>
    %9 = vector.extract_strided_slice %7 {offsets = [0, 128], sizes = [16, 128], strides = [1, 1]} : vector<16x256xf32> to vector<16x128xf32>
    %cst_5 = arith.constant 0.000000e+00 : f32
    %10 = vector.broadcast %cst_5 : f32 to vector<16x128xf32>
    %11 = arith.subf %10, %9 : vector<16x128xf32>
    %12 = math.exp %11 : vector<16x128xf32>
    %cst_6 = arith.constant 1.000000e+00 : f32
    %13 = vector.broadcast %cst_6 : f32 to vector<16x128xf32>
    %14 = arith.addf %13, %12 : vector<16x128xf32>
    %15 = tpu.reciprocal %14 {approx = true} : vector<16x128xf32> -> vector<16x128xf32>
    %16 = arith.mulf %8, %15 : vector<16x128xf32>
    %17 = vector.extract_strided_slice %1 {offsets = [1, 0], sizes = [1, 128], strides = [1, 1]} : vector<2x256xf32> to vector<1x128xf32>
    %18 = vector.broadcast %17 : vector<1x128xf32> to vector<16x128xf32>
    %19 = arith.addf %16, %18 : vector<16x128xf32>
    %c0_7 = arith.constant 0 : index
    %c0_8 = arith.constant 0 : index
    %20 = vector.load %arg5[%c0_7, %c0_8] : memref<2x256xf32, #tpu.memory_space<vmem>>, vector<2x256xf32>
    %21 = arith.truncf %19 : vector<16x128xf32> to vector<16x128xbf16>
    %c0_9 = arith.constant 0 : index
    %c0_10 = arith.constant 0 : index
    %22 = vector.load %arg4[%c0_9, %c0_10] : memref<128x256xbf16, #tpu.memory_space<vmem>>, vector<128x256xbf16>
    %cst_11 = arith.constant dense<0.000000e+00> : vector<16x256xf32>
    %23 = tpu.matmul %21, %22, %cst_11 {dimension_numbers = #tpu.dot_dimension_numbers<[1], [0], [0], [1], [0, 0, 1, 1], [], []>} : vector<16x128xbf16>, vector<128x256xbf16>, vector<16x256xf32> -> vector<16x256xf32>
    %24 = vector.extract_strided_slice %20 {offsets = [0, 0], sizes = [1, 256], strides = [1, 1]} : vector<2x256xf32> to vector<1x256xf32>
    %25 = vector.broadcast %24 : vector<1x256xf32> to vector<16x256xf32>
    %26 = arith.addf %23, %25 : vector<16x256xf32>
    %27 = vector.extract_strided_slice %26 {offsets = [0, 0], sizes = [16, 128], strides = [1, 1]} : vector<16x256xf32> to vector<16x128xf32>
    %28 = vector.extract_strided_slice %26 {offsets = [0, 128], sizes = [16, 128], strides = [1, 1]} : vector<16x256xf32> to vector<16x128xf32>
    %cst_12 = arith.constant 0.000000e+00 : f32
    %29 = vector.broadcast %cst_12 : f32 to vector<16x128xf32>
    %30 = arith.subf %29, %28 : vector<16x128xf32>
    %31 = math.exp %30 : vector<16x128xf32>
    %cst_13 = arith.constant 1.000000e+00 : f32
    %32 = vector.broadcast %cst_13 : f32 to vector<16x128xf32>
    %33 = arith.addf %32, %31 : vector<16x128xf32>
    %34 = tpu.reciprocal %33 {approx = true} : vector<16x128xf32> -> vector<16x128xf32>
    %35 = arith.mulf %27, %34 : vector<16x128xf32>
    %36 = vector.extract_strided_slice %20 {offsets = [1, 0], sizes = [1, 128], strides = [1, 1]} : vector<2x256xf32> to vector<1x128xf32>
    %37 = vector.broadcast %36 : vector<1x128xf32> to vector<16x128xf32>
    %38 = arith.addf %35, %37 : vector<16x128xf32>
    %c0_14 = arith.constant 0 : index
    %c0_15 = arith.constant 0 : index
    %39 = vector.load %arg7[%c0_14, %c0_15] : memref<2x256xf32, #tpu.memory_space<vmem>>, vector<2x256xf32>
    %40 = arith.truncf %38 : vector<16x128xf32> to vector<16x128xbf16>
    %c0_16 = arith.constant 0 : index
    %c0_17 = arith.constant 0 : index
    %41 = vector.load %arg6[%c0_16, %c0_17] : memref<128x256xbf16, #tpu.memory_space<vmem>>, vector<128x256xbf16>
    %cst_18 = arith.constant dense<0.000000e+00> : vector<16x256xf32>
    %42 = tpu.matmul %40, %41, %cst_18 {dimension_numbers = #tpu.dot_dimension_numbers<[1], [0], [0], [1], [0, 0, 1, 1], [], []>} : vector<16x128xbf16>, vector<128x256xbf16>, vector<16x256xf32> -> vector<16x256xf32>
    %43 = vector.extract_strided_slice %39 {offsets = [0, 0], sizes = [1, 256], strides = [1, 1]} : vector<2x256xf32> to vector<1x256xf32>
    %44 = vector.broadcast %43 : vector<1x256xf32> to vector<16x256xf32>
    %45 = arith.addf %42, %44 : vector<16x256xf32>
    %46 = vector.extract_strided_slice %45 {offsets = [0, 0], sizes = [16, 128], strides = [1, 1]} : vector<16x256xf32> to vector<16x128xf32>
    %47 = vector.extract_strided_slice %45 {offsets = [0, 128], sizes = [16, 128], strides = [1, 1]} : vector<16x256xf32> to vector<16x128xf32>
    %cst_19 = arith.constant 0.000000e+00 : f32
    %48 = vector.broadcast %cst_19 : f32 to vector<16x128xf32>
    %49 = arith.subf %48, %47 : vector<16x128xf32>
    %50 = math.exp %49 : vector<16x128xf32>
    %cst_20 = arith.constant 1.000000e+00 : f32
    %51 = vector.broadcast %cst_20 : f32 to vector<16x128xf32>
    %52 = arith.addf %51, %50 : vector<16x128xf32>
    %53 = tpu.reciprocal %52 {approx = true} : vector<16x128xf32> -> vector<16x128xf32>
    %54 = arith.mulf %46, %53 : vector<16x128xf32>
    %55 = vector.extract_strided_slice %39 {offsets = [1, 0], sizes = [1, 128], strides = [1, 1]} : vector<2x256xf32> to vector<1x128xf32>
    %56 = vector.broadcast %55 : vector<1x128xf32> to vector<16x128xf32>
    %57 = arith.addf %54, %56 : vector<16x128xf32>
    %c0_21 = arith.constant 0 : index
    %c0_22 = arith.constant 0 : index
    %58 = vector.load %arg9[%c0_21, %c0_22] : memref<2x256xf32, #tpu.memory_space<vmem>>, vector<2x256xf32>
    %59 = arith.truncf %57 : vector<16x128xf32> to vector<16x128xbf16>
    %c0_23 = arith.constant 0 : index
    %c0_24 = arith.constant 0 : index
    %60 = vector.load %arg8[%c0_23, %c0_24] : memref<128x256xbf16, #tpu.memory_space<vmem>>, vector<128x256xbf16>
    %cst_25 = arith.constant dense<0.000000e+00> : vector<16x256xf32>
    %61 = tpu.matmul %59, %60, %cst_25 {dimension_numbers = #tpu.dot_dimension_numbers<[1], [0], [0], [1], [0, 0, 1, 1], [], []>} : vector<16x128xbf16>, vector<128x256xbf16>, vector<16x256xf32> -> vector<16x256xf32>
    %62 = vector.extract_strided_slice %58 {offsets = [0, 0], sizes = [1, 256], strides = [1, 1]} : vector<2x256xf32> to vector<1x256xf32>
    %63 = vector.broadcast %62 : vector<1x256xf32> to vector<16x256xf32>
    %64 = arith.addf %61, %63 : vector<16x256xf32>
    %65 = vector.extract_strided_slice %64 {offsets = [0, 0], sizes = [16, 128], strides = [1, 1]} : vector<16x256xf32> to vector<16x128xf32>
    %66 = vector.extract_strided_slice %64 {offsets = [0, 128], sizes = [16, 128], strides = [1, 1]} : vector<16x256xf32> to vector<16x128xf32>
    %cst_26 = arith.constant 0.000000e+00 : f32
    %67 = vector.broadcast %cst_26 : f32 to vector<16x128xf32>
    %68 = arith.subf %67, %66 : vector<16x128xf32>
    %69 = math.exp %68 : vector<16x128xf32>
    %cst_27 = arith.constant 1.000000e+00 : f32
    %70 = vector.broadcast %cst_27 : f32 to vector<16x128xf32>
    %71 = arith.addf %70, %69 : vector<16x128xf32>
    %72 = tpu.reciprocal %71 {approx = true} : vector<16x128xf32> -> vector<16x128xf32>
    %73 = arith.mulf %65, %72 : vector<16x128xf32>
    %74 = vector.extract_strided_slice %58 {offsets = [1, 0], sizes = [1, 128], strides = [1, 1]} : vector<2x256xf32> to vector<1x128xf32>
    %75 = vector.broadcast %74 : vector<1x128xf32> to vector<16x128xf32>
    %76 = arith.addf %73, %75 : vector<16x128xf32>
    %c0_28 = arith.constant 0 : index
    %c0_29 = arith.constant 0 : index
    %77 = vector.load %arg10[%c0_28, %c0_29] : memref<16x128xf32, #tpu.memory_space<vmem>>, vector<16x128xf32>
    tpu.vector_store %arg10[%c0_28, %c0_29], %76 {strides = array<i32>} : memref<16x128xf32, #tpu.memory_space<vmem>>, vector<16x128xf32>,
    return
  }
  func.func @transform_0(%arg0: i32) -> (i32, i32) {
    %c0_i32 = arith.constant 0 : i32
    %c0_i32_0 = arith.constant 0 : i32
    return %arg0, %c0_i32 : i32, i32
  }
  func.func @transform_1(%arg0: i32) -> (i32, i32) {
    %c0_i32 = arith.constant 0 : i32
    %c0_i32_0 = arith.constant 0 : i32
    %c0_i32_1 = arith.constant 0 : i32
    return %c0_i32, %c0_i32_0 : i32, i32
  }
  func.func @transform_2(%arg0: i32) -> (i32, i32) {
    %c0_i32 = arith.constant 0 : i32
    %c0_i32_0 = arith.constant 0 : i32
    %c0_i32_1 = arith.constant 0 : i32
    return %c0_i32, %c0_i32_0 : i32, i32
  }
  func.func @transform_3(%arg0: i32) -> (i32, i32) {
    %c0_i32 = arith.constant 0 : i32
    %c0_i32_0 = arith.constant 0 : i32
    %c0_i32_1 = arith.constant 0 : i32
    return %c0_i32, %c0_i32_0 : i32, i32
  }
  func.func @transform_4(%arg0: i32) -> (i32, i32) {
    %c0_i32 = arith.constant 0 : i32
    %c0_i32_0 = arith.constant 0 : i32
    %c0_i32_1 = arith.constant 0 : i32
    return %c0_i32, %c0_i32_0 : i32, i32
  }
  func.func @transform_5(%arg0: i32) -> (i32, i32) {
    %c0_i32 = arith.constant 0 : i32
    %c0_i32_0 = arith.constant 0 : i32
    %c0_i32_1 = arith.constant 0 : i32
    return %c0_i32, %c0_i32_0 : i32, i32
  }
  func.func @transform_6(%arg0: i32) -> (i32, i32) {
    %c0_i32 = arith.constant 0 : i32
    %c0_i32_0 = arith.constant 0 : i32
    %c0_i32_1 = arith.constant 0 : i32
    return %c0_i32, %c0_i32_0 : i32, i32
  }
  func.func @transform_7(%arg0: i32) -> (i32, i32) {
    %c0_i32 = arith.constant 0 : i32
    %c0_i32_0 = arith.constant 0 : i32
    %c0_i32_1 = arith.constant 0 : i32
    return %c0_i32, %c0_i32_0 : i32, i32
  }
  func.func @transform_8(%arg0: i32) -> (i32, i32) {
    %c0_i32 = arith.constant 0 : i32
    %c0_i32_0 = arith.constant 0 : i32
    %c0_i32_1 = arith.constant 0 : i32
    return %c0_i32, %c0_i32_0 : i32, i32
  }
  func.func @transform_9(%arg0: i32) -> (i32, i32) {
    %c0_i32 = arith.constant 0 : i32
    %c0_i32_0 = arith.constant 0 : i32
    return %arg0, %c0_i32 : i32, i32
  }
}

module attributes {stable_mosaic.version = 11 : i64} {
  func.func @kernel(%arg0: i32, %arg1: memref<16x256xf32, #tpu.memory_space<vmem>>, %arg2: memref<256x256xbf16, #tpu.memory_space<vmem>>, %arg3: memref<2x256xf32, #tpu.memory_space<vmem>>, %arg4: memref<128x256xbf16, #tpu.memory_space<vmem>>, %arg5: memref<2x256xf32, #tpu.memory_space<vmem>>, %arg6: memref<128x256xbf16, #tpu.memory_space<vmem>>, %arg7: memref<2x256xf32, #tpu.memory_space<vmem>>, %arg8: memref<128x256xbf16, #tpu.memory_space<vmem>>, %arg9: memref<2x256xf32, #tpu.memory_space<vmem>>, %arg10: memref<16x128xf32, #tpu.memory_space<vmem>>) attributes {dimension_semantics = [#tpu.dimension_semantics<parallel>], iteration_bounds = array<i64: 1>, scalar_prefetch = 0 : i64, scratch_operands = 0 : i64, tpu.core_type = #tpu.core_type<tc>, window_params = [{transform_indices = @transform_0, window_bounds = array<i64: 16, 256>}, {pipeline_mode = #tpu.pipeline_mode<synchronous>, transform_indices = @transform_1, window_bounds = array<i64: 256, 256>}, {pipeline_mode = #tpu.pipeline_mode<synchronous>, transform_indices = @transform_2, window_bounds = array<i64: 2, 256>}, {pipeline_mode = #tpu.pipeline_mode<synchronous>, transform_indices = @transform_3, window_bounds = array<i64: 128, 256>}, {pipeline_mode = #tpu.pipeline_mode<synchronous>, transform_indices = @transform_4, window_bounds = array<i64: 2, 256>}, {pipeline_mode = #tpu.pipeline_mode<synchronous>, transform_indices = @transform_5, window_bounds = array<i64: 128, 256>}, {pipeline_mode = #tpu.pipeline_mode<synchronous>, transform_indices = @transform_6, window_bounds = array<i64: 2, 256>}, {pipeline_mode = #tpu.pipeline_mode<synchronous>, transform_indices = @transform_7, window_bounds = array<i64: 128, 256>}, {pipeline_mode = #tpu.pipeline_mode<synchronous>, transform_indices = @transform_8, window_bounds = array<i64: 2, 256>}, {transform_indices = @transform_9, window_bounds = array<i64: 16, 128>}]} {
    %c0 = arith.constant 0 : index
    %c0_0 = arith.constant 0 : index
    %0 = vector.load %arg1[%c0, %c0_0] : memref<16x256xf32, #tpu.memory_space<vmem>>, vector<16x256xf32>
    %c0_1 = arith.constant 0 : index
    %c0_2 = arith.constant 0 : index
    %1 = vector.load %arg3[%c0_1, %c0_2] : memref<2x256xf32, #tpu.memory_space<vmem>>, vector<2x256xf32>
    %2 = arith.truncf %0 : vector<16x256xf32> to vector<16x256xbf16>
    %c0_3 = arith.constant 0 : index
    %c0_4 = arith.constant 0 : index
    %3 = vector.load %arg2[%c0_3, %c0_4] : memref<256x256xbf16, #tpu.memory_space<vmem>>, vector<256x256xbf16>
    %cst = arith.constant dense<0.000000e+00> : vector<16x256xf32>
    %4 = tpu.matmul %2, %3, %cst {dimension_numbers = #tpu.dot_dimension_numbers<[1], [0], [0], [1], [0, 0, 1, 1], [], []>} : vector<16x256xbf16>, vector<256x256xbf16>, vector<16x256xf32> -> vector<16x256xf32>
    %5 = vector.extract_strided_slice %1 {offsets = [0, 0], sizes = [1, 256], strides = [1, 1]} : vector<2x256xf32> to vector<1x256xf32>
    %6 = vector.broadcast %5 : vector<1x256xf32> to vector<16x256xf32>
    %7 = arith.addf %4, %6 : vector<16x256xf32>
    %8 = vector.extract_strided_slice %7 {offsets = [0, 0], sizes = [16, 128], strides = [1, 1]} : vector<16x256xf32> to vector<16x128xf32>
    %9 = vector.extract_strided_slice %7 {offsets = [0, 128], sizes = [16, 128], strides = [1, 1]} : vector<16x256xf32> to vector<16x128xf32>
    %cst_5 = arith.constant 0.000000e+00 : f32
    %10 = vector.broadcast %cst_5 : f32 to vector<16x128xf32>
    %11 = arith.subf %10, %9 : vector<16x128xf32>
    %12 = math.exp %11 : vector<16x128xf32>
    %cst_6 = arith.constant 1.000000e+00 : f32
    %13 = vector.broadcast %cst_6 : f32 to vector<16x128xf32>
    %14 = arith.addf %13, %12 : vector<16x128xf32>
    %15 = tpu.reciprocal %14 {approx = true} : vector<16x128xf32> -> vector<16x128xf32>
    %16 = arith.mulf %8, %15 : vector<16x128xf32>
    %17 = vector.extract_strided_slice %1 {offsets = [1, 0], sizes = [1, 128], strides = [1, 1]} : vector<2x256xf32> to vector<1x128xf32>
    %18 = vector.broadcast %17 : vector<1x128xf32> to vector<16x128xf32>
    %19 = arith.addf %16, %18 : vector<16x128xf32>
    %c0_7 = arith.constant 0 : index
    %c0_8 = arith.constant 0 : index
    %20 = vector.load %arg5[%c0_7, %c0_8] : memref<2x256xf32, #tpu.memory_space<vmem>>, vector<2x256xf32>
    %21 = arith.truncf %19 : vector<16x128xf32> to vector<16x128xbf16>
    %c0_9 = arith.constant 0 : index
    %c0_10 = arith.constant 0 : index
    %22 = vector.load %arg4[%c0_9, %c0_10] : memref<128x256xbf16, #tpu.memory_space<vmem>>, vector<128x256xbf16>
    %cst_11 = arith.constant dense<0.000000e+00> : vector<16x256xf32>
    %23 = tpu.matmul %21, %22, %cst_11 {dimension_numbers = #tpu.dot_dimension_numbers<[1], [0], [0], [1], [0, 0, 1, 1], [], []>} : vector<16x128xbf16>, vector<128x256xbf16>, vector<16x256xf32> -> vector<16x256xf32>
    %24 = vector.extract_strided_slice %20 {offsets = [0, 0], sizes = [1, 256], strides = [1, 1]} : vector<2x256xf32> to vector<1x256xf32>
    %25 = vector.broadcast %24 : vector<1x256xf32> to vector<16x256xf32>
    %26 = arith.addf %23, %25 : vector<16x256xf32>
    %27 = vector.extract_strided_slice %26 {offsets = [0, 0], sizes = [16, 128], strides = [1, 1]} : vector<16x256xf32> to vector<16x128xf32>
    %28 = vector.extract_strided_slice %26 {offsets = [0, 128], sizes = [16, 128], strides = [1, 1]} : vector<16x256xf32> to vector<16x128xf32>
    %cst_12 = arith.constant 0.000000e+00 : f32
    %29 = vector.broadcast %cst_12 : f32 to vector<16x128xf32>
    %30 = arith.subf %29, %28 : vector<16x128xf32>
    %31 = math.exp %30 : vector<16x128xf32>
    %cst_13 = arith.constant 1.000000e+00 : f32
    %32 = vector.broadcast %cst_13 : f32 to vector<16x128xf32>
    %33 = arith.addf %32, %31 : vector<16x128xf32>
    %34 = tpu.reciprocal %33 {approx = true} : vector<16x128xf32> -> vector<16x128xf32>
    %35 = arith.mulf %27, %34 : vector<16x128xf32>
    %36 = vector.extract_strided_slice %20 {offsets = [1, 0], sizes = [1, 128], strides = [1, 1]} : vector<2x256xf32> to vector<1x128xf32>
    %37 = vector.broadcast %36 : vector<1x128xf32> to vector<16x128xf32>
    %38 = arith.addf %35, %37 : vector<16x128xf32>
    %c0_14 = arith.constant 0 : index
    %c0_15 = arith.constant 0 : index
    %39 = vector.load %arg7[%c0_14, %c0_15] : memref<2x256xf32, #tpu.memory_space<vmem>>, vector<2x256xf32>
    %40 = arith.truncf %38 : vector<16x128xf32> to vector<16x128xbf16>
    %c0_16 = arith.constant 0 : index
    %c0_17 = arith.constant 0 : index
    %41 = vector.load %arg6[%c0_16, %c0_17] : memref<128x256xbf16, #tpu.memory_space<vmem>>, vector<128x256xbf16>
    %cst_18 = arith.constant dense<0.000000e+00> : vector<16x256xf32>
    %42 = tpu.matmul %40, %41, %cst_18 {dimension_numbers = #tpu.dot_dimension_numbers<[1], [0], [0], [1], [0, 0, 1, 1], [], []>} : vector<16x128xbf16>, vector<128x256xbf16>, vector<16x256xf32> -> vector<16x256xf32>
    %43 = vector.extract_strided_slice %39 {offsets = [0, 0], sizes = [1, 256], strides = [1, 1]} : vector<2x256xf32> to vector<1x256xf32>
    %44 = vector.broadcast %43 : vector<1x256xf32> to vector<16x256xf32>
    %45 = arith.addf %42, %44 : vector<16x256xf32>
    %46 = vector.extract_strided_slice %45 {offsets = [0, 0], sizes = [16, 128], strides = [1, 1]} : vector<16x256xf32> to vector<16x128xf32>
    %47 = vector.extract_strided_slice %45 {offsets = [0, 128], sizes = [16, 128], strides = [1, 1]} : vector<16x256xf32> to vector<16x128xf32>
    %cst_19 = arith.constant 0.000000e+00 : f32
    %48 = vector.broadcast %cst_19 : f32 to vector<16x128xf32>
    %49 = arith.subf %48, %47 : vector<16x128xf32>
    %50 = math.exp %49 : vector<16x128xf32>
    %cst_20 = arith.constant 1.000000e+00 : f32
    %51 = vector.broadcast %cst_20 : f32 to vector<16x128xf32>
    %52 = arith.addf %51, %50 : vector<16x128xf32>
    %53 = tpu.reciprocal %52 {approx = true} : vector<16x128xf32> -> vector<16x128xf32>
    %54 = arith.mulf %46, %53 : vector<16x128xf32>
    %55 = vector.extract_strided_slice %39 {offsets = [1, 0], sizes = [1, 128], strides = [1, 1]} : vector<2x256xf32> to vector<1x128xf32>
    %56 = vector.broadcast %55 : vector<1x128xf32> to vector<16x128xf32>
    %57 = arith.addf %54, %56 : vector<16x128xf32>
    %c0_21 = arith.constant 0 : index
    %c0_22 = arith.constant 0 : index
    %58 = vector.load %arg9[%c0_21, %c0_22] : memref<2x256xf32, #tpu.memory_space<vmem>>, vector<2x256xf32>
    %59 = arith.truncf %57 : vector<16x128xf32> to vector<16x128xbf16>
    %c0_23 = arith.constant 0 : index
    %c0_24 = arith.constant 0 : index
    %60 = vector.load %arg8[%c0_23, %c0_24] : memref<128x256xbf16, #tpu.memory_space<vmem>>, vector<128x256xbf16>
    %cst_25 = arith.constant dense<0.000000e+00> : vector<16x256xf32>
    %61 = tpu.matmul %59, %60, %cst_25 {dimension_numbers = #tpu.dot_dimension_numbers<[1], [0], [0], [1], [0, 0, 1, 1], [], []>} : vector<16x128xbf16>, vector<128x256xbf16>, vector<16x256xf32> -> vector<16x256xf32>
    %62 = vector.extract_strided_slice %58 {offsets = [0, 0], sizes = [1, 256], strides = [1, 1]} : vector<2x256xf32> to vector<1x256xf32>
    %63 = vector.broadcast %62 : vector<1x256xf32> to vector<16x256xf32>
    %64 = arith.addf %61, %63 : vector<16x256xf32>
    %65 = vector.extract_strided_slice %64 {offsets = [0, 0], sizes = [16, 128], strides = [1, 1]} : vector<16x256xf32> to vector<16x128xf32>
    %66 = vector.extract_strided_slice %64 {offsets = [0, 128], sizes = [16, 128], strides = [1, 1]} : vector<16x256xf32> to vector<16x128xf32>
    %cst_26 = arith.constant 0.000000e+00 : f32
    %67 = vector.broadcast %cst_26 : f32 to vector<16x128xf32>
    %68 = arith.subf %67, %66 : vector<16x128xf32>
    %69 = math.exp %68 : vector<16x128xf32>
    %cst_27 = arith.constant 1.000000e+00 : f32
    %70 = vector.broadcast %cst_27 : f32 to vector<16x128xf32>
    %71 = arith.addf %70, %69 : vector<16x128xf32>
    %72 = tpu.reciprocal %71 {approx = true} : vector<16x128xf32> -> vector<16x128xf32>
    %73 = arith.mulf %65, %72 : vector<16x128xf32>
    %74 = vector.extract_strided_slice %58 {offsets = [1, 0], sizes = [1, 128], strides = [1, 1]} : vector<2x256xf32> to vector<1x128xf32>
    %75 = vector.broadcast %74 : vector<1x128xf32> to vector<16x128xf32>
    %76 = arith.addf %73, %75 : vector<16x128xf32>
    %c0_28 = arith.constant 0 : index
    %c0_29 = arith.constant 0 : index
    %77 = vector.load %arg10[%c0_28, %c0_29] : memref<16x128xf32, #tpu.memory_space<vmem>>, vector<16x128xf32>
    tpu.vector_store %arg10[%c0_28, %c0_29], %76 {strides = array<i32>} : memref<16x128xf32, #tpu.memory_space<vmem>>, vector<16x128xf32>,
    return
  }
  func.func @transform_0(%arg0: i32) -> (i32, i32) {
    %c0_i32 = arith.constant 0 : i32
    %c0_i32_0 = arith.constant 0 : i32
    return %arg0, %c0_i32 : i32, i32
  }
  func.func @transform_1(%arg0: i32) -> (i32, i32) {
    %c0_i32 = arith.constant 0 : i32
    %c0_i32_0 = arith.constant 0 : i32
    %c0_i32_1 = arith.constant 0 : i32
    return %c0_i32, %c0_i32_0 : i32, i32
  }
  func.func @transform_2(%arg0: i32) -> (i32, i32) {
    %c0_i32 = arith.constant 0 : i32
    %c0_i32_0 = arith.constant 0 : i32
    %c0_i32_1 = arith.constant 0 : i32
    return %c0_i32, %c0_i32_0 : i32, i32
  }
  func.func @transform_3(%arg0: i32) -> (i32, i32) {
    %c0_i32 = arith.constant 0 : i32
    %c0_i32_0 = arith.constant 0 : i32
    %c0_i32_1 = arith.constant 0 : i32
    return %c0_i32, %c0_i32_0 : i32, i32
  }
  func.func @transform_4(%arg0: i32) -> (i32, i32) {
    %c0_i32 = arith.constant 0 : i32
    %c0_i32_0 = arith.constant 0 : i32
    %c0_i32_1 = arith.constant 0 : i32
    return %c0_i32, %c0_i32_0 : i32, i32
  }
  func.func @transform_5(%arg0: i32) -> (i32, i32) {
    %c0_i32 = arith.constant 0 : i32
    %c0_i32_0 = arith.constant 0 : i32
    %c0_i32_1 = arith.constant 0 : i32
    return %c0_i32, %c0_i32_0 : i32, i32
  }
  func.func @transform_6(%arg0: i32) -> (i32, i32) {
    %c0_i32 = arith.constant 0 : i32
    %c0_i32_0 = arith.constant 0 : i32
    %c0_i32_1 = arith.constant 0 : i32
    return %c0_i32, %c0_i32_0 : i32, i32
  }
  func.func @transform_7(%arg0: i32) -> (i32, i32) {
    %c0_i32 = arith.constant 0 : i32
    %c0_i32_0 = arith.constant 0 : i32
    %c0_i32_1 = arith.constant 0 : i32
    return %c0_i32, %c0_i32_0 : i32, i32
  }
  func.func @transform_8(%arg0: i32) -> (i32, i32) {
    %c0_i32 = arith.constant 0 : i32
    %c0_i32_0 = arith.constant 0 : i32
    %c0_i32_1 = arith.constant 0 : i32
    return %c0_i32, %c0_i32_0 : i32, i32
  }
  func.func @transform_9(%arg0: i32) -> (i32, i32) {
    %c0_i32 = arith.constant 0 : i32
    %c0_i32_0 = arith.constant 0 : i32
    return %arg0, %c0_i32 : i32, i32
  }
}

</mosaic_0001>

<llo_original>
// kernel: tpu_custom_call.1
$region0: #{tpu_custom_call.1}
  #allocation0 [shape = 'u32[]', space=smem, size = 0x4, offset = 0x4, fixed_abs, tag = 'smem constant byte address 0x4 - core index']
  #allocation1 [shape = 'u32[72,128]{1,0:T(1,128)}', space=vmem, size = 0x9000, scoped, tag = 'internal scratch']
  %s0 = inlined_call_operand.hbm [shape: f32[16,256], index: 0, kind: input, shape index: {}]
  %s1 = inlined_call_operand.hbm [shape: bf16[256,256], index: 1, kind: input, shape index: {}]
  %s2 = inlined_call_operand.hbm [shape: f32[2,256], index: 2, kind: input, shape index: {}]
  %s3 = inlined_call_operand.hbm [shape: bf16[128,256], index: 3, kind: input, shape index: {}]
  %s4 = inlined_call_operand.hbm [shape: f32[2,256], index: 4, kind: input, shape index: {}]
  %s5 = inlined_call_operand.hbm [shape: bf16[128,256], index: 5, kind: input, shape index: {}]
  %s6 = inlined_call_operand.vmem [shape: f32[2,256], index: 6, kind: input, shape index: {}]
  %s7 = inlined_call_operand.hbm [shape: bf16[128,256], index: 7, kind: input, shape index: {}]
  %s8 = inlined_call_operand.hbm [shape: f32[2,256], index: 8, kind: input, shape index: {}]
  %s9 = inlined_call_operand.hbm [shape: f32[16,128], index: 9, kind: output, shape index: {}]
  %s10 = sld [smem:[#allocation0]]
  $region78: #{tpu_custom_call.1} parent=0
    _
  %s12 = ssub.s32 1, %s10
  %s13 = scalar_select 0, %s12, %s10
  $region1: #{tpu_custom_call.1} parent=0
    #allocation2 [shape = 'u8[16384]{0}', space=vmem, size = 0x4000, scoped, tag = 'input window, operand 0, single buffered']
    #allocation3 [shape = 's32[1]{0}', space=sflag, size = 0x4, scoped, tag = 'scoped memory for tpu_custom_call.1']
    #allocation4 [shape = 's32[1]{0}', space=sflag, size = 0x4, scoped, tag = 'scoped memory for tpu_custom_call.1']
    #allocation5 [shape = 'u8[131072]{0}', space=vmem, size = 0x20000, scoped, tag = 'input window, operand 1, single buffered']
    #allocation6 [shape = 's32[1]{0}', space=sflag, size = 0x4, scoped, tag = 'scoped memory for tpu_custom_call.1']
    #allocation7 [shape = 'u8[2048]{0}', space=vmem, size = 0x800, scoped, tag = 'input window, operand 2, single buffered']
    #allocation8 [shape = 'u8[65536]{0}', space=vmem, size = 0x10000, scoped, tag = 'input window, operand 3, single buffered']
    #allocation9 [shape = 's32[1]{0}', space=sflag, size = 0x4, scoped, tag = 'scoped memory for tpu_custom_call.1']
    #allocation10 [shape = 'u8[2048]{0}', space=vmem, size = 0x800, scoped, tag = 'input window, operand 4, single buffered']
    #allocation11 [shape = 'u8[65536]{0}', space=vmem, size = 0x10000, scoped, tag = 'input window, operand 5, single buffered']
    #allocation12 [shape = 's32[1]{0}', space=sflag, size = 0x4, scoped, tag = 'scoped memory for tpu_custom_call.1']
    #allocation13 [shape = 'u8[65536]{0}', space=vmem, size = 0x10000, scoped, tag = 'input window, operand 7, single buffered']
    #allocation14 [shape = 'u8[2048]{0}', space=vmem, size = 0x800, scoped, tag = 'input window, operand 8, single buffered']
    #allocation15 [shape = 's32[1]{0}', space=sflag, size = 0x4, scoped, tag = 'scoped memory for tpu_custom_call.1']
    #allocation16 [shape = 'u8[8192]{0}', space=vmem, size = 0x2000, scoped, tag = 'output window, operand 0, single buffered']
    %14 = vsyncpa [#allocation3], 0
    %15 = vsyncpa [#allocation6], 0
    %16 = vsyncpa [#allocation9], 0
    %17 = vsyncpa [#allocation12], 0
    %18 = vsyncpa [#allocation15], 0
    %19 = vsyncpa [#allocation4], 0
    // Predicated region
    $region2: #{tpu_custom_call.1} parent=1 // pred_check
      _
    $region3: #{tpu_custom_call.1} parent=1 // pred_check_branch
      %21 = sbr.rel (0) target = $region5
    $region4: #{tpu_custom_call.1} parent=1 // pred_region
      %23 = vsyncadd [#allocation3], 0
      %s24 = sshll.u32 %s0, 4
      %s25 = int_to_ptr.hbm [resolvable:$true] %s24
      %s26 = sshll.u32 [#allocation2], 4
      %s27 = int_to_ptr.vmem [resolvable:$true] %s26
      %32 = dma.hbm_to_vmem [thread:$0]  %s25, 512, %s27, [#allocation3], 256, 256, 16
    $region5: #{tpu_custom_call.1} parent=1 // pred_fallthru
      _
    // Predicated region
    $region6: #{tpu_custom_call.1} parent=1 // pred_check
      _
    $region7: #{tpu_custom_call.1} parent=1 // pred_check_branch
      %34 = sbr.rel (0) target = $region9
    $region8: #{tpu_custom_call.1} parent=1 // pred_region
      %36 = vsyncadd [#allocation6], 0
      %s37 = sshll.u32 %s1, 4
      %s38 = int_to_ptr.hbm [resolvable:$true] %s37
      %s39 = sshll.u32 [#allocation5], 4
      %s40 = int_to_ptr.vmem [resolvable:$true] %s39
      %45 = dma.hbm_to_vmem [thread:$0]  %s38, 4096, %s40, [#allocation6], 128, 128, 8
    $region9: #{tpu_custom_call.1} parent=1 // pred_fallthru
      _
    // Predicated region
    $region10: #{tpu_custom_call.1} parent=1 // pred_check
      _
    $region11: #{tpu_custom_call.1} parent=1 // pred_check_branch
      %47 = sbr.rel (0) target = $region13
    $region12: #{tpu_custom_call.1} parent=1 // pred_region
      %49 = vsyncadd [#allocation6], 0
      %s51 = sshll.u32 %s2, 4
      %s52 = int_to_ptr.hbm [resolvable:$true] %s51
      %s53 = sshll.u32 [#allocation7], 4
      %s54 = int_to_ptr.vmem [resolvable:$true] %s53
      %56 = dma.hbm_to_vmem [thread:$0]  %s52, 64, %s54, [#allocation6]
    $region13: #{tpu_custom_call.1} parent=1 // pred_fallthru
      _
    // Predicated region
    $region14: #{tpu_custom_call.1} parent=1 // pred_check
      _
    $region15: #{tpu_custom_call.1} parent=1 // pred_check_branch
      %58 = sbr.rel (0) target = $region17
    $region16: #{tpu_custom_call.1} parent=1 // pred_region
      %60 = vsyncadd [#allocation9], 0
      %s61 = sshll.u32 %s3, 4
      %s62 = int_to_ptr.hbm [resolvable:$true] %s61
      %s63 = sshll.u32 [#allocation8], 4
      %s64 = int_to_ptr.vmem [resolvable:$true] %s63
      %69 = dma.hbm_to_vmem [thread:$0]  %s62, 2048, %s64, [#allocation9], 128, 128, 8
    $region17: #{tpu_custom_call.1} parent=1 // pred_fallthru
      _
    // Predicated region
    $region18: #{tpu_custom_call.1} parent=1 // pred_check
      _
    $region19: #{tpu_custom_call.1} parent=1 // pred_check_branch
      %71 = sbr.rel (0) target = $region21
    $region20: #{tpu_custom_call.1} parent=1 // pred_region
      %73 = vsyncadd [#allocation9], 0
      %s75 = sshll.u32 %s4, 4
      %s76 = int_to_ptr.hbm [resolvable:$true] %s75
      %s77 = sshll.u32 [#allocation10], 4
      %s78 = int_to_ptr.vmem [resolvable:$true] %s77
      %80 = dma.hbm_to_vmem [thread:$0]  %s76, 64, %s78, [#allocation9]
    $region21: #{tpu_custom_call.1} parent=1 // pred_fallthru
      _
    // Predicated region
    $region22: #{tpu_custom_call.1} parent=1 // pred_check
      _
    $region23: #{tpu_custom_call.1} parent=1 // pred_check_branch
      %82 = sbr.rel (0) target = $region25
    $region24: #{tpu_custom_call.1} parent=1 // pred_region
      %84 = vsyncadd [#allocation12], 0
      %s85 = sshll.u32 %s5, 4
      %s86 = int_to_ptr.hbm [resolvable:$true] %s85
      %s87 = sshll.u32 [#allocation11], 4
      %s88 = int_to_ptr.vmem [resolvable:$true] %s87
      %93 = dma.hbm_to_vmem [thread:$0]  %s86, 2048, %s88, [#allocation12], 128, 128, 8
    $region25: #{tpu_custom_call.1} parent=1 // pred_fallthru
      _
    // Predicated region
    $region26: #{tpu_custom_call.1} parent=1 // pred_check
      _
    $region27: #{tpu_custom_call.1} parent=1 // pred_check_branch
      %95 = sbr.rel (0) target = $region29
    $region28: #{tpu_custom_call.1} parent=1 // pred_region
      _
    $region29: #{tpu_custom_call.1} parent=1 // pred_fallthru
      _
    // Predicated region
    $region30: #{tpu_custom_call.1} parent=1 // pred_check
      _
    $region31: #{tpu_custom_call.1} parent=1 // pred_check_branch
      %97 = sbr.rel (0) target = $region33
    $region32: #{tpu_custom_call.1} parent=1 // pred_region
      %99 = vsyncadd [#allocation12], 0
      %s100 = sshll.u32 %s7, 4
      %s101 = int_to_ptr.hbm [resolvable:$true] %s100
      %s102 = sshll.u32 [#allocation13], 4
      %s103 = int_to_ptr.vmem [resolvable:$true] %s102
      %108 = dma.hbm_to_vmem [thread:$0]  %s101, 2048, %s103, [#allocation12], 128, 128, 8
    $region33: #{tpu_custom_call.1} parent=1 // pred_fallthru
      _
    // Predicated region
    $region34: #{tpu_custom_call.1} parent=1 // pred_check
      _
    $region35: #{tpu_custom_call.1} parent=1 // pred_check_branch
      %110 = sbr.rel (0) target = $region37
    $region36: #{tpu_custom_call.1} parent=1 // pred_region
      %112 = vsyncadd [#allocation15], 0
      %s114 = sshll.u32 %s8, 4
      %s115 = int_to_ptr.hbm [resolvable:$true] %s114
      %s116 = sshll.u32 [#allocation14], 4
      %s117 = int_to_ptr.vmem [resolvable:$true] %s116
      %119 = dma.hbm_to_vmem [thread:$0]  %s115, 64, %s117, [#allocation15]
    $region37: #{tpu_custom_call.1} parent=1 // pred_fallthru
      _
    // Predicated region
    $region38: #{tpu_custom_call.1} parent=1 // pred_check
      _
    $region39: #{tpu_custom_call.1} parent=1 // pred_check_branch
      %121 = sbr.rel (0) target = $region41
    $region40: #{tpu_custom_call.1} parent=1 // pred_region
      %123 = dma.done [#allocation3], 512
    $region41: #{tpu_custom_call.1} parent=1 // pred_fallthru
      _
    // Predicated region
    $region42: #{tpu_custom_call.1} parent=1 // pred_check
      _
    $region43: #{tpu_custom_call.1} parent=1 // pred_check_branch
      %125 = sbr.rel (0) target = $region45
    $region44: #{tpu_custom_call.1} parent=1 // pred_region
      %127 = dma.done [#allocation6], 4096
    $region45: #{tpu_custom_call.1} parent=1 // pred_fallthru
      _
    // Predicated region
    $region46: #{tpu_custom_call.1} parent=1 // pred_check
      _
    $region47: #{tpu_custom_call.1} parent=1 // pred_check_branch
      %129 = sbr.rel (0) target = $region49
    $region48: #{tpu_custom_call.1} parent=1 // pred_region
      %131 = dma.done [#allocation6], 64
    $region49: #{tpu_custom_call.1} parent=1 // pred_fallthru
      _
    // Predicated region
    $region50: #{tpu_custom_call.1} parent=1 // pred_check
      _
    $region51: #{tpu_custom_call.1} parent=1 // pred_check_branch
      %133 = sbr.rel (0) target = $region53
    $region52: #{tpu_custom_call.1} parent=1 // pred_region
      %135 = dma.done [#allocation9], 2048
    $region53: #{tpu_custom_call.1} parent=1 // pred_fallthru
      _
    // Predicated region
    $region54: #{tpu_custom_call.1} parent=1 // pred_check
      _
    $region55: #{tpu_custom_call.1} parent=1 // pred_check_branch
      %137 = sbr.rel (0) target = $region57
    $region56: #{tpu_custom_call.1} parent=1 // pred_region
      %139 = dma.done [#allocation9], 64
    $region57: #{tpu_custom_call.1} parent=1 // pred_fallthru
      _
    // Predicated region
    $region58: #{tpu_custom_call.1} parent=1 // pred_check
      _
    $region59: #{tpu_custom_call.1} parent=1 // pred_check_branch
      %141 = sbr.rel (0) target = $region61
    $region60: #{tpu_custom_call.1} parent=1 // pred_region
      %143 = dma.done [#allocation12], 2048
    $region61: #{tpu_custom_call.1} parent=1 // pred_fallthru
      _
    // Predicated region
    $region62: #{tpu_custom_call.1} parent=1 // pred_check
      _
    $region63: #{tpu_custom_call.1} parent=1 // pred_check_branch
      %145 = sbr.rel (0) target = $region65
    $region64: #{tpu_custom_call.1} parent=1 // pred_region
      %147 = dma.done [#allocation12], 2048
    $region65: #{tpu_custom_call.1} parent=1 // pred_fallthru
      _
    // Predicated region
    $region66: #{tpu_custom_call.1} parent=1 // pred_check
      _
    $region67: #{tpu_custom_call.1} parent=1 // pred_check_branch
      %149 = sbr.rel (0) target = $region69
    $region68: #{tpu_custom_call.1} parent=1 // pred_region
      %151 = dma.done [#allocation15], 64
    $region69: #{tpu_custom_call.1} parent=1 // pred_fallthru
      _
    %v152 = vld [vmem:[#allocation2] sm:$0xff]
    %v153 = vld [vmem:[#allocation2 + $0x8] sm:$0xff]
    %v154 = vld [vmem:[#allocation2 + $0x10] sm:$0xff]
    %v155 = vld [vmem:[#allocation2 + $0x18] sm:$0xff]
    %v156 = vld [vmem:[#allocation7] sm:$0xf]
    %v157 = vpack.c.bf16 %v154, %v152
    %v158 = vpack.c.bf16 %v155, %v153
    %v159 = vld [vmem:[#allocation5] sm:$0xff]
    %v160 = vld [vmem:[#allocation5 + $0x8] sm:$0xff]
    %v161 = vld [vmem:[#allocation5 + $0x10] sm:$0xff]
    %v162 = vld [vmem:[#allocation5 + $0x18] sm:$0xff]
    %v163 = vld [vmem:[#allocation5 + $0x20] sm:$0xff]
    %v164 = vld [vmem:[#allocation5 + $0x28] sm:$0xff]
    %v165 = vld [vmem:[#allocation5 + $0x30] sm:$0xff]
    %v166 = vld [vmem:[#allocation5 + $0x38] sm:$0xff]
    %v167 = vld [vmem:[#allocation5 + $0x40] sm:$0xff]
    %v168 = vld [vmem:[#allocation5 + $0x48] sm:$0xff]
    %v169 = vld [vmem:[#allocation5 + $0x50] sm:$0xff]
    %v170 = vld [vmem:[#allocation5 + $0x58] sm:$0xff]
    %v171 = vld [vmem:[#allocation5 + $0x60] sm:$0xff]
    %v172 = vld [vmem:[#allocation5 + $0x68] sm:$0xff]
    %v173 = vld [vmem:[#allocation5 + $0x70] sm:$0xff]
    %v174 = vld [vmem:[#allocation5 + $0x78] sm:$0xff]
    %v175 = vld [vmem:[#allocation5 + $0x80] sm:$0xff]
    %v176 = vld [vmem:[#allocation5 + $0x88] sm:$0xff]
    %v177 = vld [vmem:[#allocation5 + $0x90] sm:$0xff]
    %v178 = vld [vmem:[#allocation5 + $0x98] sm:$0xff]
    %v179 = vld [vmem:[#allocation5 + $0xa0] sm:$0xff]
    %v180 = vld [vmem:[#allocation5 + $0xa8] sm:$0xff]
    %v181 = vld [vmem:[#allocation5 + $0xb0] sm:$0xff]
    %v182 = vld [vmem:[#allocation5 + $0xb8] sm:$0xff]
    %v183 = vld [vmem:[#allocation5 + $0xc0] sm:$0xff]
    %v184 = vld [vmem:[#allocation5 + $0xc8] sm:$0xff]
    %v185 = vld [vmem:[#allocation5 + $0xd0] sm:$0xff]
    %v186 = vld [vmem:[#allocation5 + $0xd8] sm:$0xff]
    %v187 = vld [vmem:[#allocation5 + $0xe0] sm:$0xff]
    %v188 = vld [vmem:[#allocation5 + $0xe8] sm:$0xff]
    %v189 = vld [vmem:[#allocation5 + $0xf0] sm:$0xff]
    %v190 = vld [vmem:[#allocation5 + $0xf8] sm:$0xff]
    %v192 = vperm.slane %v156, 0
    %v193 = vperm.slane %v156, 2
    %v196 = vperm.slane %v192, 0
    %v197 = vperm.slane %v193, 0
    %v230 = vunpack.c.l.b16 %v159
    %v231 = vunpack.c.h.b16 %v159
    %v232 = vunpack.c.l.b16 %v160
    %v233 = vunpack.c.h.b16 %v160
    %v234 = vunpack.c.l.b16 %v161
    %v235 = vunpack.c.h.b16 %v161
    %v236 = vunpack.c.l.b16 %v162
    %v237 = vunpack.c.h.b16 %v162
    %v238 = vunpack.c.l.b16 %v163
    %v239 = vunpack.c.h.b16 %v163
    %v240 = vunpack.c.l.b16 %v164
    %v241 = vunpack.c.h.b16 %v164
    %v242 = vunpack.c.l.b16 %v165
    %v243 = vunpack.c.h.b16 %v165
    %v244 = vunpack.c.l.b16 %v166
    %v245 = vunpack.c.h.b16 %v166
    %v246 = vunpack.c.l.b16 %v167
    %v247 = vunpack.c.h.b16 %v167
    %v248 = vunpack.c.l.b16 %v168
    %v249 = vunpack.c.h.b16 %v168
    %v250 = vunpack.c.l.b16 %v169
    %v251 = vunpack.c.h.b16 %v169
    %v252 = vunpack.c.l.b16 %v170
    %v253 = vunpack.c.h.b16 %v170
    %v254 = vunpack.c.l.b16 %v171
    %v255 = vunpack.c.h.b16 %v171
    %v256 = vunpack.c.l.b16 %v172
    %v257 = vunpack.c.h.b16 %v172
    %v258 = vunpack.c.l.b16 %v173
    %v259 = vunpack.c.h.b16 %v173
    %v260 = vunpack.c.l.b16 %v174
    %v261 = vunpack.c.h.b16 %v174
    %v262 = vunpack.c.l.b16 %v175
    %v263 = vunpack.c.h.b16 %v175
    %v264 = vunpack.c.l.b16 %v176
    %v265 = vunpack.c.h.b16 %v176
    %v266 = vunpack.c.l.b16 %v177
    %v267 = vunpack.c.h.b16 %v177
    %v268 = vunpack.c.l.b16 %v178
    %v269 = vunpack.c.h.b16 %v178
    %v270 = vunpack.c.l.b16 %v179
    %v271 = vunpack.c.h.b16 %v179
    %v272 = vunpack.c.l.b16 %v180
    %v273 = vunpack.c.h.b16 %v180
    %v274 = vunpack.c.l.b16 %v181
    %v275 = vunpack.c.h.b16 %v181
    %v276 = vunpack.c.l.b16 %v182
    %v277 = vunpack.c.h.b16 %v182
    %v278 = vunpack.c.l.b16 %v183
    %v279 = vunpack.c.h.b16 %v183
    %v280 = vunpack.c.l.b16 %v184
    %v281 = vunpack.c.h.b16 %v184
    %v282 = vunpack.c.l.b16 %v185
    %v283 = vunpack.c.h.b16 %v185
    %v284 = vunpack.c.l.b16 %v186
    %v285 = vunpack.c.h.b16 %v186
    %v286 = vunpack.c.l.b16 %v187
    %v287 = vunpack.c.h.b16 %v187
    %v288 = vunpack.c.l.b16 %v188
    %v289 = vunpack.c.h.b16 %v188
    %v290 = vunpack.c.l.b16 %v189
    %v291 = vunpack.c.h.b16 %v189
    %v292 = vunpack.c.l.b16 %v190
    %v293 = vunpack.c.h.b16 %v190
    %v294 = vpack.c.b16 %v232, %v230
    %v295 = vpack.c.b16 %v233, %v231
    %v296 = vpack.c.b16 %v236, %v234
    %v297 = vpack.c.b16 %v237, %v235
    %v298 = vpack.c.b16 %v240, %v238
    %v299 = vpack.c.b16 %v241, %v239
    %v300 = vpack.c.b16 %v244, %v242
    %v301 = vpack.c.b16 %v245, %v243
    %v302 = vpack.c.b16 %v248, %v246
    %v303 = vpack.c.b16 %v249, %v247
    %v304 = vpack.c.b16 %v252, %v250
    %v305 = vpack.c.b16 %v253, %v251
    %v306 = vpack.c.b16 %v256, %v254
    %v307 = vpack.c.b16 %v257, %v255
    %v308 = vpack.c.b16 %v260, %v258
    %v309 = vpack.c.b16 %v261, %v259
    %v310 = vpack.c.b16 %v264, %v262
    %v311 = vpack.c.b16 %v265, %v263
    %v312 = vpack.c.b16 %v268, %v266
    %v313 = vpack.c.b16 %v269, %v267
    %v314 = vpack.c.b16 %v272, %v270
    %v315 = vpack.c.b16 %v273, %v271
    %v316 = vpack.c.b16 %v276, %v274
    %v317 = vpack.c.b16 %v277, %v275
    %v318 = vpack.c.b16 %v280, %v278
    %v319 = vpack.c.b16 %v281, %v279
    %v320 = vpack.c.b16 %v284, %v282
    %v321 = vpack.c.b16 %v285, %v283
    %v322 = vpack.c.b16 %v288, %v286
    %v323 = vpack.c.b16 %v289, %v287
    %v324 = vpack.c.b16 %v292, %v290
    %v325 = vpack.c.b16 %v293, %v291
    %358 = vmatpush.bf16.msra.mxu0 %v308
    %359 = vmatpush.bf16.msra.mxu0 %v306
    %360 = vmatpush.bf16.msra.mxu0 %v304
    %361 = vmatpush.bf16.msra.mxu0 %v302
    %362 = vmatpush.bf16.msra.mxu0 %v300
    %363 = vmatpush.bf16.msra.mxu0 %v298
    %364 = vmatpush.bf16.msra.mxu0 %v296
    %365 = vmatpush.bf16.msra.mxu0 %v294
    %366 = vmatmul.bf16.gmra.mxu0 %v157
    %v367 = vpop.f32.mrf.mxu0
    %v368 = vadd.f32 %v196, %v367
    %v369 = vpop.f32.mrf.mxu0
    %v370 = vadd.f32 %v196, %v369
    %371 = vdwg.mxu0
    %372 = vmatpush.bf16.msra.mxu0 %v324
    %373 = vmatpush.bf16.msra.mxu0 %v322
    %374 = vmatpush.bf16.msra.mxu0 %v320
    %375 = vmatpush.bf16.msra.mxu0 %v318
    %376 = vmatpush.bf16.msra.mxu0 %v316
    %377 = vmatpush.bf16.msra.mxu0 %v314
    %378 = vmatpush.bf16.msra.mxu0 %v312
    %379 = vmatpush.bf16.msra.mxu0 %v310
    %380 = vmatmul.bf16.gmra.mxu0 %v158
    %v381 = vpop.f32.mrf.mxu0
    %v382 = vadd.f32 %v368, %v381
    %v383 = vpop.f32.mrf.mxu0
    %v384 = vadd.f32 %v370, %v383
    %385 = vdwg.mxu0
    %386 = vmatpush.bf16.msra.mxu0 %v309
    %387 = vmatpush.bf16.msra.mxu0 %v307
    %388 = vmatpush.bf16.msra.mxu0 %v305
    %389 = vmatpush.bf16.msra.mxu0 %v303
    %390 = vmatpush.bf16.msra.mxu0 %v301
    %391 = vmatpush.bf16.msra.mxu0 %v299
    %392 = vmatpush.bf16.msra.mxu0 %v297
    %393 = vmatpush.bf16.msra.mxu0 %v295
    %394 = vmatmul.bf16.gmra.mxu0 %v157
    %v395 = vpop.f32.mrf.mxu0
    %v396 = vadd.f32 %v197, %v395
    %v397 = vpop.f32.mrf.mxu0
    %v398 = vadd.f32 %v197, %v397
    %399 = vdwg.mxu0
    %400 = vmatpush.bf16.msra.mxu0 %v325
    %401 = vmatpush.bf16.msra.mxu0 %v323
    %402 = vmatpush.bf16.msra.mxu0 %v321
    %403 = vmatpush.bf16.msra.mxu0 %v319
    %404 = vmatpush.bf16.msra.mxu0 %v317
    %405 = vmatpush.bf16.msra.mxu0 %v315
    %406 = vmatpush.bf16.msra.mxu0 %v313
    %407 = vmatpush.bf16.msra.mxu0 %v311
    %408 = vmatmul.bf16.gmra.mxu0 %v158
    %v409 = vpop.f32.mrf.mxu0
    %v410 = vadd.f32 %v396, %v409
    %v411 = vpop.f32.mrf.mxu0
    %v412 = vadd.f32 %v398, %v411
    %413 = vdwg.mxu0
    %v414 = vsub.f32 0.0, %v410
    %v415 = vsub.f32 0.0, %v412
    %v416 = vmul.f32 %v414, 1.442695
    %v417 = vpow.pop %v416
    %v418 = vmul.f32 %v415, 1.442695
    %v419 = vpow.pop %v418
    %v420 = vadd.f32 %v417, 1.0
    %v421 = vadd.f32 %v419, 1.0
    %v422 = vrcp.pop %v420
    %v423 = vrcp.pop %v421
    %v424 = vmul.f32 %v382, %v422
    %v425 = vmul.f32 %v384, %v423
    %v426 = vperm.slane %v156, 1
    %v427 = vadd.f32 %v424, %v426
    %v428 = vadd.f32 %v425, %v426
    %v429 = vld [vmem:[#allocation10] sm:$0xf]
    %v430 = vpack.c.bf16 %v428, %v427
    %v431 = vld [vmem:[#allocation8] sm:$0xff]
    %v432 = vld [vmem:[#allocation8 + $0x8] sm:$0xff]
    %v433 = vld [vmem:[#allocation8 + $0x10] sm:$0xff]
    %v434 = vld [vmem:[#allocation8 + $0x18] sm:$0xff]
    %v435 = vld [vmem:[#allocation8 + $0x20] sm:$0xff]
    %v436 = vld [vmem:[#allocation8 + $0x28] sm:$0xff]
    %v437 = vld [vmem:[#allocation8 + $0x30] sm:$0xff]
    %v438 = vld [vmem:[#allocation8 + $0x38] sm:$0xff]
    %v439 = vld [vmem:[#allocation8 + $0x40] sm:$0xff]
    %v440 = vld [vmem:[#allocation8 + $0x48] sm:$0xff]
    %v441 = vld [vmem:[#allocation8 + $0x50] sm:$0xff]
    %v442 = vld [vmem:[#allocation8 + $0x58] sm:$0xff]
    %v443 = vld [vmem:[#allocation8 + $0x60] sm:$0xff]
    %v444 = vld [vmem:[#allocation8 + $0x68] sm:$0xff]
    %v445 = vld [vmem:[#allocation8 + $0x70] sm:$0xff]
    %v446 = vld [vmem:[#allocation8 + $0x78] sm:$0xff]
    %v448 = vperm.slane %v429, 0
    %v449 = vperm.slane %v429, 2
    %v452 = vperm.slane %v448, 0
    %v453 = vperm.slane %v449, 0
    %v470 = vunpack.c.l.b16 %v431
    %v471 = vunpack.c.h.b16 %v431
    %v472 = vunpack.c.l.b16 %v432
    %v473 = vunpack.c.h.b16 %v432
    %v474 = vunpack.c.l.b16 %v433
    %v475 = vunpack.c.h.b16 %v433
    %v476 = vunpack.c.l.b16 %v434
    %v477 = vunpack.c.h.b16 %v434
    %v478 = vunpack.c.l.b16 %v435
    %v479 = vunpack.c.h.b16 %v435
    %v480 = vunpack.c.l.b16 %v436
    %v481 = vunpack.c.h.b16 %v436
    %v482 = vunpack.c.l.b16 %v437
    %v483 = vunpack.c.h.b16 %v437
    %v484 = vunpack.c.l.b16 %v438
    %v485 = vunpack.c.h.b16 %v438
    %v486 = vunpack.c.l.b16 %v439
    %v487 = vunpack.c.h.b16 %v439
    %v488 = vunpack.c.l.b16 %v440
    %v489 = vunpack.c.h.b16 %v440
    %v490 = vunpack.c.l.b16 %v441
    %v491 = vunpack.c.h.b16 %v441
    %v492 = vunpack.c.l.b16 %v442
    %v493 = vunpack.c.h.b16 %v442
    %v494 = vunpack.c.l.b16 %v443
    %v495 = vunpack.c.h.b16 %v443
    %v496 = vunpack.c.l.b16 %v444
    %v497 = vunpack.c.h.b16 %v444
    %v498 = vunpack.c.l.b16 %v445
    %v499 = vunpack.c.h.b16 %v445
    %v500 = vunpack.c.l.b16 %v446
    %v501 = vunpack.c.h.b16 %v446
    %v502 = vpack.c.b16 %v472, %v470
    %v503 = vpack.c.b16 %v473, %v471
    %v504 = vpack.c.b16 %v476, %v474
    %v505 = vpack.c.b16 %v477, %v475
    %v506 = vpack.c.b16 %v480, %v478
    %v507 = vpack.c.b16 %v481, %v479
    %v508 = vpack.c.b16 %v484, %v482
    %v509 = vpack.c.b16 %v485, %v483
    %v510 = vpack.c.b16 %v488, %v486
    %v511 = vpack.c.b16 %v489, %v487
    %v512 = vpack.c.b16 %v492, %v490
    %v513 = vpack.c.b16 %v493, %v491
    %v514 = vpack.c.b16 %v496, %v494
    %v515 = vpack.c.b16 %v497, %v495
    %v516 = vpack.c.b16 %v500, %v498
    %v517 = vpack.c.b16 %v501, %v499
    %534 = vmatpush.bf16.msra.mxu0 %v516
    %535 = vmatpush.bf16.msra.mxu0 %v514
    %536 = vmatpush.bf16.msra.mxu0 %v512
    %537 = vmatpush.bf16.msra.mxu0 %v510
    %538 = vmatpush.bf16.msra.mxu0 %v508
    %539 = vmatpush.bf16.msra.mxu0 %v506
    %540 = vmatpush.bf16.msra.mxu0 %v504
    %541 = vmatpush.bf16.msra.mxu0 %v502
    %542 = vmatmul.bf16.gmra.mxu0 %v430
    %v543 = vpop.f32.mrf.mxu0
    %v544 = vadd.f32 %v452, %v543
    %v545 = vpop.f32.mrf.mxu0
    %v546 = vadd.f32 %v452, %v545
    %547 = vdwg.mxu0
    %548 = vmatpush.bf16.msra.mxu0 %v517
    %549 = vmatpush.bf16.msra.mxu0 %v515
    %550 = vmatpush.bf16.msra.mxu0 %v513
    %551 = vmatpush.bf16.msra.mxu0 %v511
    %552 = vmatpush.bf16.msra.mxu0 %v509
    %553 = vmatpush.bf16.msra.mxu0 %v507
    %554 = vmatpush.bf16.msra.mxu0 %v505
    %555 = vmatpush.bf16.msra.mxu0 %v503
    %556 = vmatmul.bf16.gmra.mxu0 %v430
    %v557 = vpop.f32.mrf.mxu0
    %v558 = vadd.f32 %v453, %v557
    %v559 = vpop.f32.mrf.mxu0
    %v560 = vadd.f32 %v453, %v559
    %561 = vdwg.mxu0
    %v562 = vsub.f32 0.0, %v558
    %v563 = vsub.f32 0.0, %v560
    %v564 = vmul.f32 %v562, 1.442695
    %v565 = vpow.pop %v564
    %v566 = vmul.f32 %v563, 1.442695
    %v567 = vpow.pop %v566
    %v568 = vadd.f32 %v565, 1.0
    %v569 = vadd.f32 %v567, 1.0
    %v570 = vrcp.pop %v568
    %v571 = vrcp.pop %v569
    %v572 = vmul.f32 %v544, %v570
    %v573 = vmul.f32 %v546, %v571
    %v574 = vperm.slane %v429, 1
    %v575 = vadd.f32 %v572, %v574
    %v576 = vadd.f32 %v573, %v574
    %v577 = vld [vmem:[%s6] sm:$0xf]
    %v578 = vpack.c.bf16 %v576, %v575
    %v579 = vld [vmem:[#allocation11] sm:$0xff]
    %v580 = vld [vmem:[#allocation11 + $0x8] sm:$0xff]
    %v581 = vld [vmem:[#allocation11 + $0x10] sm:$0xff]
    %v582 = vld [vmem:[#allocation11 + $0x18] sm:$0xff]
    %v583 = vld [vmem:[#allocation11 + $0x20] sm:$0xff]
    %v584 = vld [vmem:[#allocation11 + $0x28] sm:$0xff]
    %v585 = vld [vmem:[#allocation11 + $0x30] sm:$0xff]
    %v586 = vld [vmem:[#allocation11 + $0x38] sm:$0xff]
    %v587 = vld [vmem:[#allocation11 + $0x40] sm:$0xff]
    %v588 = vld [vmem:[#allocation11 + $0x48] sm:$0xff]
    %v589 = vld [vmem:[#allocation11 + $0x50] sm:$0xff]
    %v590 = vld [vmem:[#allocation11 + $0x58] sm:$0xff]
    %v591 = vld [vmem:[#allocation11 + $0x60] sm:$0xff]
    %v592 = vld [vmem:[#allocation11 + $0x68] sm:$0xff]
    %v593 = vld [vmem:[#allocation11 + $0x70] sm:$0xff]
    %v594 = vld [vmem:[#allocation11 + $0x78] sm:$0xff]
    %v596 = vperm.slane %v577, 0
    %v597 = vperm.slane %v577, 2
    %v600 = vperm.slane %v596, 0
    %v601 = vperm.slane %v597, 0
    %v618 = vunpack.c.l.b16 %v579
    %v619 = vunpack.c.h.b16 %v579
    %v620 = vunpack.c.l.b16 %v580
    %v621 = vunpack.c.h.b16 %v580
    %v622 = vunpack.c.l.b16 %v581
    %v623 = vunpack.c.h.b16 %v581
    %v624 = vunpack.c.l.b16 %v582
    %v625 = vunpack.c.h.b16 %v582
    %v626 = vunpack.c.l.b16 %v583
    %v627 = vunpack.c.h.b16 %v583
    %v628 = vunpack.c.l.b16 %v584
    %v629 = vunpack.c.h.b16 %v584
    %v630 = vunpack.c.l.b16 %v585
    %v631 = vunpack.c.h.b16 %v585
    %v632 = vunpack.c.l.b16 %v586
    %v633 = vunpack.c.h.b16 %v586
    %v634 = vunpack.c.l.b16 %v587
    %v635 = vunpack.c.h.b16 %v587
    %v636 = vunpack.c.l.b16 %v588
    %v637 = vunpack.c.h.b16 %v588
    %v638 = vunpack.c.l.b16 %v589
    %v639 = vunpack.c.h.b16 %v589
    %v640 = vunpack.c.l.b16 %v590
    %v641 = vunpack.c.h.b16 %v590
    %v642 = vunpack.c.l.b16 %v591
    %v643 = vunpack.c.h.b16 %v591
    %v644 = vunpack.c.l.b16 %v592
    %v645 = vunpack.c.h.b16 %v592
    %v646 = vunpack.c.l.b16 %v593
    %v647 = vunpack.c.h.b16 %v593
    %v648 = vunpack.c.l.b16 %v594
    %v649 = vunpack.c.h.b16 %v594
    %v650 = vpack.c.b16 %v620, %v618
    %v651 = vpack.c.b16 %v621, %v619
    %v652 = vpack.c.b16 %v624, %v622
    %v653 = vpack.c.b16 %v625, %v623
    %v654 = vpack.c.b16 %v628, %v626
    %v655 = vpack.c.b16 %v629, %v627
    %v656 = vpack.c.b16 %v632, %v630
    %v657 = vpack.c.b16 %v633, %v631
    %v658 = vpack.c.b16 %v636, %v634
    %v659 = vpack.c.b16 %v637, %v635
    %v660 = vpack.c.b16 %v640, %v638
    %v661 = vpack.c.b16 %v641, %v639
    %v662 = vpack.c.b16 %v644, %v642
    %v663 = vpack.c.b16 %v645, %v643
    %v664 = vpack.c.b16 %v648, %v646
    %v665 = vpack.c.b16 %v649, %v647
    %682 = vmatpush.bf16.msra.mxu0 %v664
    %683 = vmatpush.bf16.msra.mxu0 %v662
    %684 = vmatpush.bf16.msra.mxu0 %v660
    %685 = vmatpush.bf16.msra.mxu0 %v658
    %686 = vmatpush.bf16.msra.mxu0 %v656
    %687 = vmatpush.bf16.msra.mxu0 %v654
    %688 = vmatpush.bf16.msra.mxu0 %v652
    %689 = vmatpush.bf16.msra.mxu0 %v650
    %690 = vmatmul.bf16.gmra.mxu0 %v578
    %v691 = vpop.f32.mrf.mxu0
    %v692 = vadd.f32 %v600, %v691
    %v693 = vpop.f32.mrf.mxu0
    %v694 = vadd.f32 %v600, %v693
    %695 = vdwg.mxu0
    %696 = vmatpush.bf16.msra.mxu0 %v665
    %697 = vmatpush.bf16.msra.mxu0 %v663
    %698 = vmatpush.bf16.msra.mxu0 %v661
    %699 = vmatpush.bf16.msra.mxu0 %v659
    %700 = vmatpush.bf16.msra.mxu0 %v657
    %701 = vmatpush.bf16.msra.mxu0 %v655
    %702 = vmatpush.bf16.msra.mxu0 %v653
    %703 = vmatpush.bf16.msra.mxu0 %v651
    %704 = vmatmul.bf16.gmra.mxu0 %v578
    %v705 = vpop.f32.mrf.mxu0
    %v706 = vadd.f32 %v601, %v705
    %v707 = vpop.f32.mrf.mxu0
    %v708 = vadd.f32 %v601, %v707
    %709 = vdwg.mxu0
    %v710 = vsub.f32 0.0, %v706
    %v711 = vsub.f32 0.0, %v708
    %v712 = vmul.f32 %v710, 1.442695
    %v713 = vpow.pop %v712
    %v714 = vmul.f32 %v711, 1.442695
    %v715 = vpow.pop %v714
    %v716 = vadd.f32 %v713, 1.0
    %v717 = vadd.f32 %v715, 1.0
    %v718 = vrcp.pop %v716
    %v719 = vrcp.pop %v717
    %v720 = vmul.f32 %v692, %v718
    %v721 = vmul.f32 %v694, %v719
    %v722 = vperm.slane %v577, 1
    %v723 = vadd.f32 %v720, %v722
    %v724 = vadd.f32 %v721, %v722
    %v725 = vld [vmem:[#allocation14] sm:$0xf]
    %v726 = vpack.c.bf16 %v724, %v723
    %v727 = vld [vmem:[#allocation13] sm:$0xff]
    %v728 = vld [vmem:[#allocation13 + $0x8] sm:$0xff]
    %v729 = vld [vmem:[#allocation13 + $0x10] sm:$0xff]
    %v730 = vld [vmem:[#allocation13 + $0x18] sm:$0xff]
    %v731 = vld [vmem:[#allocation13 + $0x20] sm:$0xff]
    %v732 = vld [vmem:[#allocation13 + $0x28] sm:$0xff]
    %v733 = vld [vmem:[#allocation13 + $0x30] sm:$0xff]
    %v734 = vld [vmem:[#allocation13 + $0x38] sm:$0xff]
    %v735 = vld [vmem:[#allocation13 + $0x40] sm:$0xff]
    %v736 = vld [vmem:[#allocation13 + $0x48] sm:$0xff]
    %v737 = vld [vmem:[#allocation13 + $0x50] sm:$0xff]
    %v738 = vld [vmem:[#allocation13 + $0x58] sm:$0xff]
    %v739 = vld [vmem:[#allocation13 + $0x60] sm:$0xff]
    %v740 = vld [vmem:[#allocation13 + $0x68] sm:$0xff]
    %v741 = vld [vmem:[#allocation13 + $0x70] sm:$0xff]
    %v742 = vld [vmem:[#allocation13 + $0x78] sm:$0xff]
    %v744 = vperm.slane %v725, 0
    %v745 = vperm.slane %v725, 2
    %v748 = vperm.slane %v744, 0
    %v749 = vperm.slane %v745, 0
    %v766 = vunpack.c.l.b16 %v727
    %v767 = vunpack.c.h.b16 %v727
    %v768 = vunpack.c.l.b16 %v728
    %v769 = vunpack.c.h.b16 %v728
    %v770 = vunpack.c.l.b16 %v729
    %v771 = vunpack.c.h.b16 %v729
    %v772 = vunpack.c.l.b16 %v730
    %v773 = vunpack.c.h.b16 %v730
    %v774 = vunpack.c.l.b16 %v731
    %v775 = vunpack.c.h.b16 %v731
    %v776 = vunpack.c.l.b16 %v732
    %v777 = vunpack.c.h.b16 %v732
    %v778 = vunpack.c.l.b16 %v733
    %v779 = vunpack.c.h.b16 %v733
    %v780 = vunpack.c.l.b16 %v734
    %v781 = vunpack.c.h.b16 %v734
    %v782 = vunpack.c.l.b16 %v735
    %v783 = vunpack.c.h.b16 %v735
    %v784 = vunpack.c.l.b16 %v736
    %v785 = vunpack.c.h.b16 %v736
    %v786 = vunpack.c.l.b16 %v737
    %v787 = vunpack.c.h.b16 %v737
    %v788 = vunpack.c.l.b16 %v738
    %v789 = vunpack.c.h.b16 %v738
    %v790 = vunpack.c.l.b16 %v739
    %v791 = vunpack.c.h.b16 %v739
    %v792 = vunpack.c.l.b16 %v740
    %v793 = vunpack.c.h.b16 %v740
    %v794 = vunpack.c.l.b16 %v741
    %v795 = vunpack.c.h.b16 %v741
    %v796 = vunpack.c.l.b16 %v742
    %v797 = vunpack.c.h.b16 %v742
    %v798 = vpack.c.b16 %v768, %v766
    %v799 = vpack.c.b16 %v769, %v767
    %v800 = vpack.c.b16 %v772, %v770
    %v801 = vpack.c.b16 %v773, %v771
    %v802 = vpack.c.b16 %v776, %v774
    %v803 = vpack.c.b16 %v777, %v775
    %v804 = vpack.c.b16 %v780, %v778
    %v805 = vpack.c.b16 %v781, %v779
    %v806 = vpack.c.b16 %v784, %v782
    %v807 = vpack.c.b16 %v785, %v783
    %v808 = vpack.c.b16 %v788, %v786
    %v809 = vpack.c.b16 %v789, %v787
    %v810 = vpack.c.b16 %v792, %v790
    %v811 = vpack.c.b16 %v793, %v791
    %v812 = vpack.c.b16 %v796, %v794
    %v813 = vpack.c.b16 %v797, %v795
    %830 = vmatpush.bf16.msra.mxu0 %v812
    %831 = vmatpush.bf16.msra.mxu0 %v810
    %832 = vmatpush.bf16.msra.mxu0 %v808
    %833 = vmatpush.bf16.msra.mxu0 %v806
    %834 = vmatpush.bf16.msra.mxu0 %v804
    %835 = vmatpush.bf16.msra.mxu0 %v802
    %836 = vmatpush.bf16.msra.mxu0 %v800
    %837 = vmatpush.bf16.msra.mxu0 %v798
    %838 = vmatmul.bf16.gmra.mxu0 %v726
    %v839 = vpop.f32.mrf.mxu0
    %v840 = vadd.f32 %v748, %v839
    %v841 = vpop.f32.mrf.mxu0
    %v842 = vadd.f32 %v748, %v841
    %843 = vdwg.mxu0
    %844 = vmatpush.bf16.msra.mxu0 %v813
    %845 = vmatpush.bf16.msra.mxu0 %v811
    %846 = vmatpush.bf16.msra.mxu0 %v809
    %847 = vmatpush.bf16.msra.mxu0 %v807
    %848 = vmatpush.bf16.msra.mxu0 %v805
    %849 = vmatpush.bf16.msra.mxu0 %v803
    %850 = vmatpush.bf16.msra.mxu0 %v801
    %851 = vmatpush.bf16.msra.mxu0 %v799
    %852 = vmatmul.bf16.gmra.mxu0 %v726
    %v853 = vpop.f32.mrf.mxu0
    %v854 = vadd.f32 %v749, %v853
    %v855 = vpop.f32.mrf.mxu0
    %v856 = vadd.f32 %v749, %v855
    %857 = vdwg.mxu0
    %v858 = vsub.f32 0.0, %v854
    %v859 = vsub.f32 0.0, %v856
    %v860 = vmul.f32 %v858, 1.442695
    %v861 = vpow.pop %v860
    %v862 = vmul.f32 %v859, 1.442695
    %v863 = vpow.pop %v862
    %v864 = vadd.f32 %v861, 1.0
    %v865 = vadd.f32 %v863, 1.0
    %v866 = vrcp.pop %v864
    %v867 = vrcp.pop %v865
    %v868 = vmul.f32 %v840, %v866
    %v869 = vmul.f32 %v842, %v867
    %v870 = vperm.slane %v725, 1
    %v871 = vadd.f32 %v868, %v870
    %v872 = vadd.f32 %v869, %v870
    %873 = vst [vmem:[#allocation16] sm:$0xff] %v871
    %874 = vst [vmem:[#allocation16 + $0x8] sm:$0xff] %v872
    // Predicated region
    $region70: #{tpu_custom_call.1} parent=1 // pred_check
      _
    $region71: #{tpu_custom_call.1} parent=1 // pred_check_branch
      %876 = sbr.rel (0) target = $region73
    $region72: #{tpu_custom_call.1} parent=1 // pred_region
      %878 = vsyncadd [#allocation4], 0
      %s879 = sshll.u32 [#allocation16], 4
      %s880 = int_to_ptr.vmem [resolvable:$true] %s879
      %s881 = sshll.u32 %s9, 4
      %s882 = int_to_ptr.hbm [resolvable:$true] %s881
      %887 = dma.vmem_to_hbm [thread:$0]  %s880, 256, %s882, [#allocation4], 128, 128, 8
    $region73: #{tpu_custom_call.1} parent=1 // pred_fallthru
      _
    // Predicated region
    $region74: #{tpu_custom_call.1} parent=1 // pred_check
      _
    $region75: #{tpu_custom_call.1} parent=1 // pred_check_branch
      %889 = sbr.rel (0) target = $region77
    $region76: #{tpu_custom_call.1} parent=1 // pred_region
      %891 = dma.done [#allocation4], 256
    $region77: #{tpu_custom_call.1} parent=1 // pred_fallthru
      _
    %892 = vsyncpa [#allocation3], 1
    %893 = vsyncpa [#allocation6], 1
    %894 = vsyncpa [#allocation9], 1
    %895 = vsyncpa [#allocation12], 1
    %896 = vsyncpa [#allocation15], 1
    %897 = vsyncpa [#allocation4], 1

// kernel: tpu_custom_call.1
$region0: #{tpu_custom_call.1}
  #allocation0 [shape = 'u32[]', space=smem, size = 0x4, offset = 0x4, fixed_abs, tag = 'smem constant byte address 0x4 - core index']
  #allocation1 [shape = 'u32[72,128]{1,0:T(1,128)}', space=vmem, size = 0x9000, scoped, tag = 'internal scratch']
  %s0 = inlined_call_operand.hbm [shape: f32[16,256], index: 0, kind: input, shape index: {}]
  %s1 = inlined_call_operand.hbm [shape: bf16[256,256], index: 1, kind: input, shape index: {}]
  %s2 = inlined_call_operand.hbm [shape: f32[2,256], index: 2, kind: input, shape index: {}]
  %s3 = inlined_call_operand.hbm [shape: bf16[128,256], index: 3, kind: input, shape index: {}]
  %s4 = inlined_call_operand.hbm [shape: f32[2,256], index: 4, kind: input, shape index: {}]
  %s5 = inlined_call_operand.hbm [shape: bf16[128,256], index: 5, kind: input, shape index: {}]
  %s6 = inlined_call_operand.vmem [shape: f32[2,256], index: 6, kind: input, shape index: {}]
  %s7 = inlined_call_operand.hbm [shape: bf16[128,256], index: 7, kind: input, shape index: {}]
  %s8 = inlined_call_operand.hbm [shape: f32[2,256], index: 8, kind: input, shape index: {}]
  %s9 = inlined_call_operand.hbm [shape: f32[16,128], index: 9, kind: output, shape index: {}]
  %s10 = sld [smem:[#allocation0]]
  $region78: #{tpu_custom_call.1} parent=0
    _
  %s12 = ssub.s32 1, %s10
  %s13 = scalar_select 0, %s12, %s10
  $region1: #{tpu_custom_call.1} parent=0
    #allocation2 [shape = 'u8[16384]{0}', space=vmem, size = 0x4000, scoped, tag = 'input window, operand 0, single buffered']
    #allocation3 [shape = 's32[1]{0}', space=sflag, size = 0x4, scoped, tag = 'scoped memory for tpu_custom_call.1']
    #allocation4 [shape = 's32[1]{0}', space=sflag, size = 0x4, scoped, tag = 'scoped memory for tpu_custom_call.1']
    #allocation5 [shape = 'u8[131072]{0}', space=vmem, size = 0x20000, scoped, tag = 'input window, operand 1, single buffered']
    #allocation6 [shape = 's32[1]{0}', space=sflag, size = 0x4, scoped, tag = 'scoped memory for tpu_custom_call.1']
    #allocation7 [shape = 'u8[2048]{0}', space=vmem, size = 0x800, scoped, tag = 'input window, operand 2, single buffered']
    #allocation8 [shape = 'u8[65536]{0}', space=vmem, size = 0x10000, scoped, tag = 'input window, operand 3, single buffered']
    #allocation9 [shape = 's32[1]{0}', space=sflag, size = 0x4, scoped, tag = 'scoped memory for tpu_custom_call.1']
    #allocation10 [shape = 'u8[2048]{0}', space=vmem, size = 0x800, scoped, tag = 'input window, operand 4, single buffered']
    #allocation11 [shape = 'u8[65536]{0}', space=vmem, size = 0x10000, scoped, tag = 'input window, operand 5, single buffered']
    #allocation12 [shape = 's32[1]{0}', space=sflag, size = 0x4, scoped, tag = 'scoped memory for tpu_custom_call.1']
    #allocation13 [shape = 'u8[65536]{0}', space=vmem, size = 0x10000, scoped, tag = 'input window, operand 7, single buffered']
    #allocation14 [shape = 'u8[2048]{0}', space=vmem, size = 0x800, scoped, tag = 'input window, operand 8, single buffered']
    #allocation15 [shape = 's32[1]{0}', space=sflag, size = 0x4, scoped, tag = 'scoped memory for tpu_custom_call.1']
    #allocation16 [shape = 'u8[8192]{0}', space=vmem, size = 0x2000, scoped, tag = 'output window, operand 0, single buffered']
    %14 = vsyncpa [#allocation3], 0
    %15 = vsyncpa [#allocation6], 0
    %16 = vsyncpa [#allocation9], 0
    %17 = vsyncpa [#allocation12], 0
    %18 = vsyncpa [#allocation15], 0
    %19 = vsyncpa [#allocation4], 0
    // Predicated region
    $region2: #{tpu_custom_call.1} parent=1 // pred_check
      _
    $region3: #{tpu_custom_call.1} parent=1 // pred_check_branch
      %21 = sbr.rel (0) target = $region5
    $region4: #{tpu_custom_call.1} parent=1 // pred_region
      %23 = vsyncadd [#allocation3], 0
      %s24 = sshll.u32 %s0, 4
      %s25 = int_to_ptr.hbm [resolvable:$true] %s24
      %s26 = sshll.u32 [#allocation2], 4
      %s27 = int_to_ptr.vmem [resolvable:$true] %s26
      %32 = dma.hbm_to_vmem [thread:$0]  %s25, 512, %s27, [#allocation3], 256, 256, 16
    $region5: #{tpu_custom_call.1} parent=1 // pred_fallthru
      _
    // Predicated region
    $region6: #{tpu_custom_call.1} parent=1 // pred_check
      _
    $region7: #{tpu_custom_call.1} parent=1 // pred_check_branch
      %34 = sbr.rel (0) target = $region9
    $region8: #{tpu_custom_call.1} parent=1 // pred_region
      %36 = vsyncadd [#allocation6], 0
      %s37 = sshll.u32 %s1, 4
      %s38 = int_to_ptr.hbm [resolvable:$true] %s37
      %s39 = sshll.u32 [#allocation5], 4
      %s40 = int_to_ptr.vmem [resolvable:$true] %s39
      %45 = dma.hbm_to_vmem [thread:$0]  %s38, 4096, %s40, [#allocation6], 128, 128, 8
    $region9: #{tpu_custom_call.1} parent=1 // pred_fallthru
      _
    // Predicated region
    $region10: #{tpu_custom_call.1} parent=1 // pred_check
      _
    $region11: #{tpu_custom_call.1} parent=1 // pred_check_branch
      %47 = sbr.rel (0) target = $region13
    $region12: #{tpu_custom_call.1} parent=1 // pred_region
      %49 = vsyncadd [#allocation6], 0
      %s51 = sshll.u32 %s2, 4
      %s52 = int_to_ptr.hbm [resolvable:$true] %s51
      %s53 = sshll.u32 [#allocation7], 4
      %s54 = int_to_ptr.vmem [resolvable:$true] %s53
      %56 = dma.hbm_to_vmem [thread:$0]  %s52, 64, %s54, [#allocation6]
    $region13: #{tpu_custom_call.1} parent=1 // pred_fallthru
      _
    // Predicated region
    $region14: #{tpu_custom_call.1} parent=1 // pred_check
      _
    $region15: #{tpu_custom_call.1} parent=1 // pred_check_branch
      %58 = sbr.rel (0) target = $region17
    $region16: #{tpu_custom_call.1} parent=1 // pred_region
      %60 = vsyncadd [#allocation9], 0
      %s61 = sshll.u32 %s3, 4
      %s62 = int_to_ptr.hbm [resolvable:$true] %s61
      %s63 = sshll.u32 [#allocation8], 4
      %s64 = int_to_ptr.vmem [resolvable:$true] %s63
      %69 = dma.hbm_to_vmem [thread:$0]  %s62, 2048, %s64, [#allocation9], 128, 128, 8
    $region17: #{tpu_custom_call.1} parent=1 // pred_fallthru
      _
    // Predicated region
    $region18: #{tpu_custom_call.1} parent=1 // pred_check
      _
    $region19: #{tpu_custom_call.1} parent=1 // pred_check_branch
      %71 = sbr.rel (0) target = $region21
    $region20: #{tpu_custom_call.1} parent=1 // pred_region
      %73 = vsyncadd [#allocation9], 0
      %s75 = sshll.u32 %s4, 4
      %s76 = int_to_ptr.hbm [resolvable:$true] %s75
      %s77 = sshll.u32 [#allocation10], 4
      %s78 = int_to_ptr.vmem [resolvable:$true] %s77
      %80 = dma.hbm_to_vmem [thread:$0]  %s76, 64, %s78, [#allocation9]
    $region21: #{tpu_custom_call.1} parent=1 // pred_fallthru
      _
    // Predicated region
    $region22: #{tpu_custom_call.1} parent=1 // pred_check
      _
    $region23: #{tpu_custom_call.1} parent=1 // pred_check_branch
      %82 = sbr.rel (0) target = $region25
    $region24: #{tpu_custom_call.1} parent=1 // pred_region
      %84 = vsyncadd [#allocation12], 0
      %s85 = sshll.u32 %s5, 4
      %s86 = int_to_ptr.hbm [resolvable:$true] %s85
      %s87 = sshll.u32 [#allocation11], 4
      %s88 = int_to_ptr.vmem [resolvable:$true] %s87
      %93 = dma.hbm_to_vmem [thread:$0]  %s86, 2048, %s88, [#allocation12], 128, 128, 8
    $region25: #{tpu_custom_call.1} parent=1 // pred_fallthru
      _
    // Predicated region
    $region26: #{tpu_custom_call.1} parent=1 // pred_check
      _
    $region27: #{tpu_custom_call.1} parent=1 // pred_check_branch
      %95 = sbr.rel (0) target = $region29
    $region28: #{tpu_custom_call.1} parent=1 // pred_region
      _
    $region29: #{tpu_custom_call.1} parent=1 // pred_fallthru
      _
    // Predicated region
    $region30: #{tpu_custom_call.1} parent=1 // pred_check
      _
    $region31: #{tpu_custom_call.1} parent=1 // pred_check_branch
      %97 = sbr.rel (0) target = $region33
    $region32: #{tpu_custom_call.1} parent=1 // pred_region
      %99 = vsyncadd [#allocation12], 0
      %s100 = sshll.u32 %s7, 4
      %s101 = int_to_ptr.hbm [resolvable:$true] %s100
      %s102 = sshll.u32 [#allocation13], 4
      %s103 = int_to_ptr.vmem [resolvable:$true] %s102
      %108 = dma.hbm_to_vmem [thread:$0]  %s101, 2048, %s103, [#allocation12], 128, 128, 8
    $region33: #{tpu_custom_call.1} parent=1 // pred_fallthru
      _
    // Predicated region
    $region34: #{tpu_custom_call.1} parent=1 // pred_check
      _
    $region35: #{tpu_custom_call.1} parent=1 // pred_check_branch
      %110 = sbr.rel (0) target = $region37
    $region36: #{tpu_custom_call.1} parent=1 // pred_region
      %112 = vsyncadd [#allocation15], 0
      %s114 = sshll.u32 %s8, 4
      %s115 = int_to_ptr.hbm [resolvable:$true] %s114
      %s116 = sshll.u32 [#allocation14], 4
      %s117 = int_to_ptr.vmem [resolvable:$true] %s116
      %119 = dma.hbm_to_vmem [thread:$0]  %s115, 64, %s117, [#allocation15]
    $region37: #{tpu_custom_call.1} parent=1 // pred_fallthru
      _
    // Predicated region
    $region38: #{tpu_custom_call.1} parent=1 // pred_check
      _
    $region39: #{tpu_custom_call.1} parent=1 // pred_check_branch
      %121 = sbr.rel (0) target = $region41
    $region40: #{tpu_custom_call.1} parent=1 // pred_region
      %123 = dma.done [#allocation3], 512
    $region41: #{tpu_custom_call.1} parent=1 // pred_fallthru
      _
    // Predicated region
    $region42: #{tpu_custom_call.1} parent=1 // pred_check
      _
    $region43: #{tpu_custom_call.1} parent=1 // pred_check_branch
      %125 = sbr.rel (0) target = $region45
    $region44: #{tpu_custom_call.1} parent=1 // pred_region
      %127 = dma.done [#allocation6], 4096
    $region45: #{tpu_custom_call.1} parent=1 // pred_fallthru
      _
    // Predicated region
    $region46: #{tpu_custom_call.1} parent=1 // pred_check
      _
    $region47: #{tpu_custom_call.1} parent=1 // pred_check_branch
      %129 = sbr.rel (0) target = $region49
    $region48: #{tpu_custom_call.1} parent=1 // pred_region
      %131 = dma.done [#allocation6], 64
    $region49: #{tpu_custom_call.1} parent=1 // pred_fallthru
      _
    // Predicated region
    $region50: #{tpu_custom_call.1} parent=1 // pred_check
      _
    $region51: #{tpu_custom_call.1} parent=1 // pred_check_branch
      %133 = sbr.rel (0) target = $region53
    $region52: #{tpu_custom_call.1} parent=1 // pred_region
      %135 = dma.done [#allocation9], 2048
    $region53: #{tpu_custom_call.1} parent=1 // pred_fallthru
      _
    // Predicated region
    $region54: #{tpu_custom_call.1} parent=1 // pred_check
      _
    $region55: #{tpu_custom_call.1} parent=1 // pred_check_branch
      %137 = sbr.rel (0) target = $region57
    $region56: #{tpu_custom_call.1} parent=1 // pred_region
      %139 = dma.done [#allocation9], 64
    $region57: #{tpu_custom_call.1} parent=1 // pred_fallthru
      _
    // Predicated region
    $region58: #{tpu_custom_call.1} parent=1 // pred_check
      _
    $region59: #{tpu_custom_call.1} parent=1 // pred_check_branch
      %141 = sbr.rel (0) target = $region61
    $region60: #{tpu_custom_call.1} parent=1 // pred_region
      %143 = dma.done [#allocation12], 2048
    $region61: #{tpu_custom_call.1} parent=1 // pred_fallthru
      _
    // Predicated region
    $region62: #{tpu_custom_call.1} parent=1 // pred_check
      _
    $region63: #{tpu_custom_call.1} parent=1 // pred_check_branch
      %145 = sbr.rel (0) target = $region65
    $region64: #{tpu_custom_call.1} parent=1 // pred_region
      %147 = dma.done [#allocation12], 2048
    $region65: #{tpu_custom_call.1} parent=1 // pred_fallthru
      _
    // Predicated region
    $region66: #{tpu_custom_call.1} parent=1 // pred_check
      _
    $region67: #{tpu_custom_call.1} parent=1 // pred_check_branch
      %149 = sbr.rel (0) target = $region69
    $region68: #{tpu_custom_call.1} parent=1 // pred_region
      %151 = dma.done [#allocation15], 64
    $region69: #{tpu_custom_call.1} parent=1 // pred_fallthru
      _
    %v152 = vld [vmem:[#allocation2] sm:$0xff]
    %v153 = vld [vmem:[#allocation2 + $0x8] sm:$0xff]
    %v154 = vld [vmem:[#allocation2 + $0x10] sm:$0xff]
    %v155 = vld [vmem:[#allocation2 + $0x18] sm:$0xff]
    %v156 = vld [vmem:[#allocation7] sm:$0xf]
    %v157 = vpack.c.bf16 %v154, %v152
    %v158 = vpack.c.bf16 %v155, %v153
    %v159 = vld [vmem:[#allocation5] sm:$0xff]
    %v160 = vld [vmem:[#allocation5 + $0x8] sm:$0xff]
    %v161 = vld [vmem:[#allocation5 + $0x10] sm:$0xff]
    %v162 = vld [vmem:[#allocation5 + $0x18] sm:$0xff]
    %v163 = vld [vmem:[#allocation5 + $0x20] sm:$0xff]
    %v164 = vld [vmem:[#allocation5 + $0x28] sm:$0xff]
    %v165 = vld [vmem:[#allocation5 + $0x30] sm:$0xff]
    %v166 = vld [vmem:[#allocation5 + $0x38] sm:$0xff]
    %v167 = vld [vmem:[#allocation5 + $0x40] sm:$0xff]
    %v168 = vld [vmem:[#allocation5 + $0x48] sm:$0xff]
    %v169 = vld [vmem:[#allocation5 + $0x50] sm:$0xff]
    %v170 = vld [vmem:[#allocation5 + $0x58] sm:$0xff]
    %v171 = vld [vmem:[#allocation5 + $0x60] sm:$0xff]
    %v172 = vld [vmem:[#allocation5 + $0x68] sm:$0xff]
    %v173 = vld [vmem:[#allocation5 + $0x70] sm:$0xff]
    %v174 = vld [vmem:[#allocation5 + $0x78] sm:$0xff]
    %v175 = vld [vmem:[#allocation5 + $0x80] sm:$0xff]
    %v176 = vld [vmem:[#allocation5 + $0x88] sm:$0xff]
    %v177 = vld [vmem:[#allocation5 + $0x90] sm:$0xff]
    %v178 = vld [vmem:[#allocation5 + $0x98] sm:$0xff]
    %v179 = vld [vmem:[#allocation5 + $0xa0] sm:$0xff]
    %v180 = vld [vmem:[#allocation5 + $0xa8] sm:$0xff]
    %v181 = vld [vmem:[#allocation5 + $0xb0] sm:$0xff]
    %v182 = vld [vmem:[#allocation5 + $0xb8] sm:$0xff]
    %v183 = vld [vmem:[#allocation5 + $0xc0] sm:$0xff]
    %v184 = vld [vmem:[#allocation5 + $0xc8] sm:$0xff]
    %v185 = vld [vmem:[#allocation5 + $0xd0] sm:$0xff]
    %v186 = vld [vmem:[#allocation5 + $0xd8] sm:$0xff]
    %v187 = vld [vmem:[#allocation5 + $0xe0] sm:$0xff]
    %v188 = vld [vmem:[#allocation5 + $0xe8] sm:$0xff]
    %v189 = vld [vmem:[#allocation5 + $0xf0] sm:$0xff]
    %v190 = vld [vmem:[#allocation5 + $0xf8] sm:$0xff]
    %v192 = vperm.slane %v156, 0
    %v193 = vperm.slane %v156, 2
    %v196 = vperm.slane %v192, 0
    %v197 = vperm.slane %v193, 0
    %v230 = vunpack.c.l.b16 %v159
    %v231 = vunpack.c.h.b16 %v159
    %v232 = vunpack.c.l.b16 %v160
    %v233 = vunpack.c.h.b16 %v160
    %v234 = vunpack.c.l.b16 %v161
    %v235 = vunpack.c.h.b16 %v161
    %v236 = vunpack.c.l.b16 %v162
    %v237 = vunpack.c.h.b16 %v162
    %v238 = vunpack.c.l.b16 %v163
    %v239 = vunpack.c.h.b16 %v163
    %v240 = vunpack.c.l.b16 %v164
    %v241 = vunpack.c.h.b16 %v164
    %v242 = vunpack.c.l.b16 %v165
    %v243 = vunpack.c.h.b16 %v165
    %v244 = vunpack.c.l.b16 %v166
    %v245 = vunpack.c.h.b16 %v166
    %v246 = vunpack.c.l.b16 %v167
    %v247 = vunpack.c.h.b16 %v167
    %v248 = vunpack.c.l.b16 %v168
    %v249 = vunpack.c.h.b16 %v168
    %v250 = vunpack.c.l.b16 %v169
    %v251 = vunpack.c.h.b16 %v169
    %v252 = vunpack.c.l.b16 %v170
    %v253 = vunpack.c.h.b16 %v170
    %v254 = vunpack.c.l.b16 %v171
    %v255 = vunpack.c.h.b16 %v171
    %v256 = vunpack.c.l.b16 %v172
    %v257 = vunpack.c.h.b16 %v172
    %v258 = vunpack.c.l.b16 %v173
    %v259 = vunpack.c.h.b16 %v173
    %v260 = vunpack.c.l.b16 %v174
    %v261 = vunpack.c.h.b16 %v174
    %v262 = vunpack.c.l.b16 %v175
    %v263 = vunpack.c.h.b16 %v175
    %v264 = vunpack.c.l.b16 %v176
    %v265 = vunpack.c.h.b16 %v176
    %v266 = vunpack.c.l.b16 %v177
    %v267 = vunpack.c.h.b16 %v177
    %v268 = vunpack.c.l.b16 %v178
    %v269 = vunpack.c.h.b16 %v178
    %v270 = vunpack.c.l.b16 %v179
    %v271 = vunpack.c.h.b16 %v179
    %v272 = vunpack.c.l.b16 %v180
    %v273 = vunpack.c.h.b16 %v180
    %v274 = vunpack.c.l.b16 %v181
    %v275 = vunpack.c.h.b16 %v181
    %v276 = vunpack.c.l.b16 %v182
    %v277 = vunpack.c.h.b16 %v182
    %v278 = vunpack.c.l.b16 %v183
    %v279 = vunpack.c.h.b16 %v183
    %v280 = vunpack.c.l.b16 %v184
    %v281 = vunpack.c.h.b16 %v184
    %v282 = vunpack.c.l.b16 %v185
    %v283 = vunpack.c.h.b16 %v185
    %v284 = vunpack.c.l.b16 %v186
    %v285 = vunpack.c.h.b16 %v186
    %v286 = vunpack.c.l.b16 %v187
    %v287 = vunpack.c.h.b16 %v187
    %v288 = vunpack.c.l.b16 %v188
    %v289 = vunpack.c.h.b16 %v188
    %v290 = vunpack.c.l.b16 %v189
    %v291 = vunpack.c.h.b16 %v189
    %v292 = vunpack.c.l.b16 %v190
    %v293 = vunpack.c.h.b16 %v190
    %v294 = vpack.c.b16 %v232, %v230
    %v295 = vpack.c.b16 %v233, %v231
    %v296 = vpack.c.b16 %v236, %v234
    %v297 = vpack.c.b16 %v237, %v235
    %v298 = vpack.c.b16 %v240, %v238
    %v299 = vpack.c.b16 %v241, %v239
    %v300 = vpack.c.b16 %v244, %v242
    %v301 = vpack.c.b16 %v245, %v243
    %v302 = vpack.c.b16 %v248, %v246
    %v303 = vpack.c.b16 %v249, %v247
    %v304 = vpack.c.b16 %v252, %v250
    %v305 = vpack.c.b16 %v253, %v251
    %v306 = vpack.c.b16 %v256, %v254
    %v307 = vpack.c.b16 %v257, %v255
    %v308 = vpack.c.b16 %v260, %v258
    %v309 = vpack.c.b16 %v261, %v259
    %v310 = vpack.c.b16 %v264, %v262
    %v311 = vpack.c.b16 %v265, %v263
    %v312 = vpack.c.b16 %v268, %v266
    %v313 = vpack.c.b16 %v269, %v267
    %v314 = vpack.c.b16 %v272, %v270
    %v315 = vpack.c.b16 %v273, %v271
    %v316 = vpack.c.b16 %v276, %v274
    %v317 = vpack.c.b16 %v277, %v275
    %v318 = vpack.c.b16 %v280, %v278
    %v319 = vpack.c.b16 %v281, %v279
    %v320 = vpack.c.b16 %v284, %v282
    %v321 = vpack.c.b16 %v285, %v283
    %v322 = vpack.c.b16 %v288, %v286
    %v323 = vpack.c.b16 %v289, %v287
    %v324 = vpack.c.b16 %v292, %v290
    %v325 = vpack.c.b16 %v293, %v291
    %358 = vmatpush.bf16.msra.mxu0 %v308
    %359 = vmatpush.bf16.msra.mxu0 %v306
    %360 = vmatpush.bf16.msra.mxu0 %v304
    %361 = vmatpush.bf16.msra.mxu0 %v302
    %362 = vmatpush.bf16.msra.mxu0 %v300
    %363 = vmatpush.bf16.msra.mxu0 %v298
    %364 = vmatpush.bf16.msra.mxu0 %v296
    %365 = vmatpush.bf16.msra.mxu0 %v294
    %366 = vmatmul.bf16.gmra.mxu0 %v157
    %v367 = vpop.f32.mrf.mxu0
    %v368 = vadd.f32 %v196, %v367
    %v369 = vpop.f32.mrf.mxu0
    %v370 = vadd.f32 %v196, %v369
    %371 = vdwg.mxu0
    %372 = vmatpush.bf16.msra.mxu0 %v324
    %373 = vmatpush.bf16.msra.mxu0 %v322
    %374 = vmatpush.bf16.msra.mxu0 %v320
    %375 = vmatpush.bf16.msra.mxu0 %v318
    %376 = vmatpush.bf16.msra.mxu0 %v316
    %377 = vmatpush.bf16.msra.mxu0 %v314
    %378 = vmatpush.bf16.msra.mxu0 %v312
    %379 = vmatpush.bf16.msra.mxu0 %v310
    %380 = vmatmul.bf16.gmra.mxu0 %v158
    %v381 = vpop.f32.mrf.mxu0
    %v382 = vadd.f32 %v368, %v381
    %v383 = vpop.f32.mrf.mxu0
    %v384 = vadd.f32 %v370, %v383
    %385 = vdwg.mxu0
    %386 = vmatpush.bf16.msra.mxu0 %v309
    %387 = vmatpush.bf16.msra.mxu0 %v307
    %388 = vmatpush.bf16.msra.mxu0 %v305
    %389 = vmatpush.bf16.msra.mxu0 %v303
    %390 = vmatpush.bf16.msra.mxu0 %v301
    %391 = vmatpush.bf16.msra.mxu0 %v299
    %392 = vmatpush.bf16.msra.mxu0 %v297
    %393 = vmatpush.bf16.msra.mxu0 %v295
    %394 = vmatmul.bf16.gmra.mxu0 %v157
    %v395 = vpop.f32.mrf.mxu0
    %v396 = vadd.f32 %v197, %v395
    %v397 = vpop.f32.mrf.mxu0
    %v398 = vadd.f32 %v197, %v397
    %399 = vdwg.mxu0
    %400 = vmatpush.bf16.msra.mxu0 %v325
    %401 = vmatpush.bf16.msra.mxu0 %v323
    %402 = vmatpush.bf16.msra.mxu0 %v321
    %403 = vmatpush.bf16.msra.mxu0 %v319
    %404 = vmatpush.bf16.msra.mxu0 %v317
    %405 = vmatpush.bf16.msra.mxu0 %v315
    %406 = vmatpush.bf16.msra.mxu0 %v313
    %407 = vmatpush.bf16.msra.mxu0 %v311
    %408 = vmatmul.bf16.gmra.mxu0 %v158
    %v409 = vpop.f32.mrf.mxu0
    %v410 = vadd.f32 %v396, %v409
    %v411 = vpop.f32.mrf.mxu0
    %v412 = vadd.f32 %v398, %v411
    %413 = vdwg.mxu0
    %v414 = vsub.f32 0.0, %v410
    %v415 = vsub.f32 0.0, %v412
    %v416 = vmul.f32 %v414, 1.442695
    %v417 = vpow.pop %v416
    %v418 = vmul.f32 %v415, 1.442695
    %v419 = vpow.pop %v418
    %v420 = vadd.f32 %v417, 1.0
    %v421 = vadd.f32 %v419, 1.0
    %v422 = vrcp.pop %v420
    %v423 = vrcp.pop %v421
    %v424 = vmul.f32 %v382, %v422
    %v425 = vmul.f32 %v384, %v423
    %v426 = vperm.slane %v156, 1
    %v427 = vadd.f32 %v424, %v426
    %v428 = vadd.f32 %v425, %v426
    %v429 = vld [vmem:[#allocation10] sm:$0xf]
    %v430 = vpack.c.bf16 %v428, %v427
    %v431 = vld [vmem:[#allocation8] sm:$0xff]
    %v432 = vld [vmem:[#allocation8 + $0x8] sm:$0xff]
    %v433 = vld [vmem:[#allocation8 + $0x10] sm:$0xff]
    %v434 = vld [vmem:[#allocation8 + $0x18] sm:$0xff]
    %v435 = vld [vmem:[#allocation8 + $0x20] sm:$0xff]
    %v436 = vld [vmem:[#allocation8 + $0x28] sm:$0xff]
    %v437 = vld [vmem:[#allocation8 + $0x30] sm:$0xff]
    %v438 = vld [vmem:[#allocation8 + $0x38] sm:$0xff]
    %v439 = vld [vmem:[#allocation8 + $0x40] sm:$0xff]
    %v440 = vld [vmem:[#allocation8 + $0x48] sm:$0xff]
    %v441 = vld [vmem:[#allocation8 + $0x50] sm:$0xff]
    %v442 = vld [vmem:[#allocation8 + $0x58] sm:$0xff]
    %v443 = vld [vmem:[#allocation8 + $0x60] sm:$0xff]
    %v444 = vld [vmem:[#allocation8 + $0x68] sm:$0xff]
    %v445 = vld [vmem:[#allocation8 + $0x70] sm:$0xff]
    %v446 = vld [vmem:[#allocation8 + $0x78] sm:$0xff]
    %v448 = vperm.slane %v429, 0
    %v449 = vperm.slane %v429, 2
    %v452 = vperm.slane %v448, 0
    %v453 = vperm.slane %v449, 0
    %v470 = vunpack.c.l.b16 %v431
    %v471 = vunpack.c.h.b16 %v431
    %v472 = vunpack.c.l.b16 %v432
    %v473 = vunpack.c.h.b16 %v432
    %v474 = vunpack.c.l.b16 %v433
    %v475 = vunpack.c.h.b16 %v433
    %v476 = vunpack.c.l.b16 %v434
    %v477 = vunpack.c.h.b16 %v434
    %v478 = vunpack.c.l.b16 %v435
    %v479 = vunpack.c.h.b16 %v435
    %v480 = vunpack.c.l.b16 %v436
    %v481 = vunpack.c.h.b16 %v436
    %v482 = vunpack.c.l.b16 %v437
    %v483 = vunpack.c.h.b16 %v437
    %v484 = vunpack.c.l.b16 %v438
    %v485 = vunpack.c.h.b16 %v438
    %v486 = vunpack.c.l.b16 %v439
    %v487 = vunpack.c.h.b16 %v439
    %v488 = vunpack.c.l.b16 %v440
    %v489 = vunpack.c.h.b16 %v440
    %v490 = vunpack.c.l.b16 %v441
    %v491 = vunpack.c.h.b16 %v441
    %v492 = vunpack.c.l.b16 %v442
    %v493 = vunpack.c.h.b16 %v442
    %v494 = vunpack.c.l.b16 %v443
    %v495 = vunpack.c.h.b16 %v443
    %v496 = vunpack.c.l.b16 %v444
    %v497 = vunpack.c.h.b16 %v444
    %v498 = vunpack.c.l.b16 %v445
    %v499 = vunpack.c.h.b16 %v445
    %v500 = vunpack.c.l.b16 %v446
    %v501 = vunpack.c.h.b16 %v446
    %v502 = vpack.c.b16 %v472, %v470
    %v503 = vpack.c.b16 %v473, %v471
    %v504 = vpack.c.b16 %v476, %v474
    %v505 = vpack.c.b16 %v477, %v475
    %v506 = vpack.c.b16 %v480, %v478
    %v507 = vpack.c.b16 %v481, %v479
    %v508 = vpack.c.b16 %v484, %v482
    %v509 = vpack.c.b16 %v485, %v483
    %v510 = vpack.c.b16 %v488, %v486
    %v511 = vpack.c.b16 %v489, %v487
    %v512 = vpack.c.b16 %v492, %v490
    %v513 = vpack.c.b16 %v493, %v491
    %v514 = vpack.c.b16 %v496, %v494
    %v515 = vpack.c.b16 %v497, %v495
    %v516 = vpack.c.b16 %v500, %v498
    %v517 = vpack.c.b16 %v501, %v499
    %534 = vmatpush.bf16.msra.mxu0 %v516
    %535 = vmatpush.bf16.msra.mxu0 %v514
    %536 = vmatpush.bf16.msra.mxu0 %v512
    %537 = vmatpush.bf16.msra.mxu0 %v510
    %538 = vmatpush.bf16.msra.mxu0 %v508
    %539 = vmatpush.bf16.msra.mxu0 %v506
    %540 = vmatpush.bf16.msra.mxu0 %v504
    %541 = vmatpush.bf16.msra.mxu0 %v502
    %542 = vmatmul.bf16.gmra.mxu0 %v430
    %v543 = vpop.f32.mrf.mxu0
    %v544 = vadd.f32 %v452, %v543
    %v545 = vpop.f32.mrf.mxu0
    %v546 = vadd.f32 %v452, %v545
    %547 = vdwg.mxu0
    %548 = vmatpush.bf16.msra.mxu0 %v517
    %549 = vmatpush.bf16.msra.mxu0 %v515
    %550 = vmatpush.bf16.msra.mxu0 %v513
    %551 = vmatpush.bf16.msra.mxu0 %v511
    %552 = vmatpush.bf16.msra.mxu0 %v509
    %553 = vmatpush.bf16.msra.mxu0 %v507
    %554 = vmatpush.bf16.msra.mxu0 %v505
    %555 = vmatpush.bf16.msra.mxu0 %v503
    %556 = vmatmul.bf16.gmra.mxu0 %v430
    %v557 = vpop.f32.mrf.mxu0
    %v558 = vadd.f32 %v453, %v557
    %v559 = vpop.f32.mrf.mxu0
    %v560 = vadd.f32 %v453, %v559
    %561 = vdwg.mxu0
    %v562 = vsub.f32 0.0, %v558
    %v563 = vsub.f32 0.0, %v560
    %v564 = vmul.f32 %v562, 1.442695
    %v565 = vpow.pop %v564
    %v566 = vmul.f32 %v563, 1.442695
    %v567 = vpow.pop %v566
    %v568 = vadd.f32 %v565, 1.0
    %v569 = vadd.f32 %v567, 1.0
    %v570 = vrcp.pop %v568
    %v571 = vrcp.pop %v569
    %v572 = vmul.f32 %v544, %v570
    %v573 = vmul.f32 %v546, %v571
    %v574 = vperm.slane %v429, 1
    %v575 = vadd.f32 %v572, %v574
    %v576 = vadd.f32 %v573, %v574
    %v577 = vld [vmem:[%s6] sm:$0xf]
    %v578 = vpack.c.bf16 %v576, %v575
    %v579 = vld [vmem:[#allocation11] sm:$0xff]
    %v580 = vld [vmem:[#allocation11 + $0x8] sm:$0xff]
    %v581 = vld [vmem:[#allocation11 + $0x10] sm:$0xff]
    %v582 = vld [vmem:[#allocation11 + $0x18] sm:$0xff]
    %v583 = vld [vmem:[#allocation11 + $0x20] sm:$0xff]
    %v584 = vld [vmem:[#allocation11 + $0x28] sm:$0xff]
    %v585 = vld [vmem:[#allocation11 + $0x30] sm:$0xff]
    %v586 = vld [vmem:[#allocation11 + $0x38] sm:$0xff]
    %v587 = vld [vmem:[#allocation11 + $0x40] sm:$0xff]
    %v588 = vld [vmem:[#allocation11 + $0x48] sm:$0xff]
    %v589 = vld [vmem:[#allocation11 + $0x50] sm:$0xff]
    %v590 = vld [vmem:[#allocation11 + $0x58] sm:$0xff]
    %v591 = vld [vmem:[#allocation11 + $0x60] sm:$0xff]
    %v592 = vld [vmem:[#allocation11 + $0x68] sm:$0xff]
    %v593 = vld [vmem:[#allocation11 + $0x70] sm:$0xff]
    %v594 = vld [vmem:[#allocation11 + $0x78] sm:$0xff]
    %v596 = vperm.slane %v577, 0
    %v597 = vperm.slane %v577, 2
    %v600 = vperm.slane %v596, 0
    %v601 = vperm.slane %v597, 0
    %v618 = vunpack.c.l.b16 %v579
    %v619 = vunpack.c.h.b16 %v579
    %v620 = vunpack.c.l.b16 %v580
    %v621 = vunpack.c.h.b16 %v580
    %v622 = vunpack.c.l.b16 %v581
    %v623 = vunpack.c.h.b16 %v581
    %v624 = vunpack.c.l.b16 %v582
    %v625 = vunpack.c.h.b16 %v582
    %v626 = vunpack.c.l.b16 %v583
    %v627 = vunpack.c.h.b16 %v583
    %v628 = vunpack.c.l.b16 %v584
    %v629 = vunpack.c.h.b16 %v584
    %v630 = vunpack.c.l.b16 %v585
    %v631 = vunpack.c.h.b16 %v585
    %v632 = vunpack.c.l.b16 %v586
    %v633 = vunpack.c.h.b16 %v586
    %v634 = vunpack.c.l.b16 %v587
    %v635 = vunpack.c.h.b16 %v587
    %v636 = vunpack.c.l.b16 %v588
    %v637 = vunpack.c.h.b16 %v588
    %v638 = vunpack.c.l.b16 %v589
    %v639 = vunpack.c.h.b16 %v589
    %v640 = vunpack.c.l.b16 %v590
    %v641 = vunpack.c.h.b16 %v590
    %v642 = vunpack.c.l.b16 %v591
    %v643 = vunpack.c.h.b16 %v591
    %v644 = vunpack.c.l.b16 %v592
    %v645 = vunpack.c.h.b16 %v592
    %v646 = vunpack.c.l.b16 %v593
    %v647 = vunpack.c.h.b16 %v593
    %v648 = vunpack.c.l.b16 %v594
    %v649 = vunpack.c.h.b16 %v594
    %v650 = vpack.c.b16 %v620, %v618
    %v651 = vpack.c.b16 %v621, %v619
    %v652 = vpack.c.b16 %v624, %v622
    %v653 = vpack.c.b16 %v625, %v623
    %v654 = vpack.c.b16 %v628, %v626
    %v655 = vpack.c.b16 %v629, %v627
    %v656 = vpack.c.b16 %v632, %v630
    %v657 = vpack.c.b16 %v633, %v631
    %v658 = vpack.c.b16 %v636, %v634
    %v659 = vpack.c.b16 %v637, %v635
    %v660 = vpack.c.b16 %v640, %v638
    %v661 = vpack.c.b16 %v641, %v639
    %v662 = vpack.c.b16 %v644, %v642
    %v663 = vpack.c.b16 %v645, %v643
    %v664 = vpack.c.b16 %v648, %v646
    %v665 = vpack.c.b16 %v649, %v647
    %682 = vmatpush.bf16.msra.mxu0 %v664
    %683 = vmatpush.bf16.msra.mxu0 %v662
    %684 = vmatpush.bf16.msra.mxu0 %v660
    %685 = vmatpush.bf16.msra.mxu0 %v658
    %686 = vmatpush.bf16.msra.mxu0 %v656
    %687 = vmatpush.bf16.msra.mxu0 %v654
    %688 = vmatpush.bf16.msra.mxu0 %v652
    %689 = vmatpush.bf16.msra.mxu0 %v650
    %690 = vmatmul.bf16.gmra.mxu0 %v578
    %v691 = vpop.f32.mrf.mxu0
    %v692 = vadd.f32 %v600, %v691
    %v693 = vpop.f32.mrf.mxu0
    %v694 = vadd.f32 %v600, %v693
    %695 = vdwg.mxu0
    %696 = vmatpush.bf16.msra.mxu0 %v665
    %697 = vmatpush.bf16.msra.mxu0 %v663
    %698 = vmatpush.bf16.msra.mxu0 %v661
    %699 = vmatpush.bf16.msra.mxu0 %v659
    %700 = vmatpush.bf16.msra.mxu0 %v657
    %701 = vmatpush.bf16.msra.mxu0 %v655
    %702 = vmatpush.bf16.msra.mxu0 %v653
    %703 = vmatpush.bf16.msra.mxu0 %v651
    %704 = vmatmul.bf16.gmra.mxu0 %v578
    %v705 = vpop.f32.mrf.mxu0
    %v706 = vadd.f32 %v601, %v705
    %v707 = vpop.f32.mrf.mxu0
    %v708 = vadd.f32 %v601, %v707
    %709 = vdwg.mxu0
    %v710 = vsub.f32 0.0, %v706
    %v711 = vsub.f32 0.0, %v708
    %v712 = vmul.f32 %v710, 1.442695
    %v713 = vpow.pop %v712
    %v714 = vmul.f32 %v711, 1.442695
    %v715 = vpow.pop %v714
    %v716 = vadd.f32 %v713, 1.0
    %v717 = vadd.f32 %v715, 1.0
    %v718 = vrcp.pop %v716
    %v719 = vrcp.pop %v717
    %v720 = vmul.f32 %v692, %v718
    %v721 = vmul.f32 %v694, %v719
    %v722 = vperm.slane %v577, 1
    %v723 = vadd.f32 %v720, %v722
    %v724 = vadd.f32 %v721, %v722
    %v725 = vld [vmem:[#allocation14] sm:$0xf]
    %v726 = vpack.c.bf16 %v724, %v723
    %v727 = vld [vmem:[#allocation13] sm:$0xff]
    %v728 = vld [vmem:[#allocation13 + $0x8] sm:$0xff]
    %v729 = vld [vmem:[#allocation13 + $0x10] sm:$0xff]
    %v730 = vld [vmem:[#allocation13 + $0x18] sm:$0xff]
    %v731 = vld [vmem:[#allocation13 + $0x20] sm:$0xff]
    %v732 = vld [vmem:[#allocation13 + $0x28] sm:$0xff]
    %v733 = vld [vmem:[#allocation13 + $0x30] sm:$0xff]
    %v734 = vld [vmem:[#allocation13 + $0x38] sm:$0xff]
    %v735 = vld [vmem:[#allocation13 + $0x40] sm:$0xff]
    %v736 = vld [vmem:[#allocation13 + $0x48] sm:$0xff]
    %v737 = vld [vmem:[#allocation13 + $0x50] sm:$0xff]
    %v738 = vld [vmem:[#allocation13 + $0x58] sm:$0xff]
    %v739 = vld [vmem:[#allocation13 + $0x60] sm:$0xff]
    %v740 = vld [vmem:[#allocation13 + $0x68] sm:$0xff]
    %v741 = vld [vmem:[#allocation13 + $0x70] sm:$0xff]
    %v742 = vld [vmem:[#allocation13 + $0x78] sm:$0xff]
    %v744 = vperm.slane %v725, 0
    %v745 = vperm.slane %v725, 2
    %v748 = vperm.slane %v744, 0
    %v749 = vperm.slane %v745, 0
    %v766 = vunpack.c.l.b16 %v727
    %v767 = vunpack.c.h.b16 %v727
    %v768 = vunpack.c.l.b16 %v728
    %v769 = vunpack.c.h.b16 %v728
    %v770 = vunpack.c.l.b16 %v729
    %v771 = vunpack.c.h.b16 %v729
    %v772 = vunpack.c.l.b16 %v730
    %v773 = vunpack.c.h.b16 %v730
    %v774 = vunpack.c.l.b16 %v731
    %v775 = vunpack.c.h.b16 %v731
    %v776 = vunpack.c.l.b16 %v732
    %v777 = vunpack.c.h.b16 %v732
    %v778 = vunpack.c.l.b16 %v733
    %v779 = vunpack.c.h.b16 %v733
    %v780 = vunpack.c.l.b16 %v734
    %v781 = vunpack.c.h.b16 %v734
    %v782 = vunpack.c.l.b16 %v735
    %v783 = vunpack.c.h.b16 %v735
    %v784 = vunpack.c.l.b16 %v736
    %v785 = vunpack.c.h.b16 %v736
    %v786 = vunpack.c.l.b16 %v737
    %v787 = vunpack.c.h.b16 %v737
    %v788 = vunpack.c.l.b16 %v738
    %v789 = vunpack.c.h.b16 %v738
    %v790 = vunpack.c.l.b16 %v739
    %v791 = vunpack.c.h.b16 %v739
    %v792 = vunpack.c.l.b16 %v740
    %v793 = vunpack.c.h.b16 %v740
    %v794 = vunpack.c.l.b16 %v741
    %v795 = vunpack.c.h.b16 %v741
    %v796 = vunpack.c.l.b16 %v742
    %v797 = vunpack.c.h.b16 %v742
    %v798 = vpack.c.b16 %v768, %v766
    %v799 = vpack.c.b16 %v769, %v767
    %v800 = vpack.c.b16 %v772, %v770
    %v801 = vpack.c.b16 %v773, %v771
    %v802 = vpack.c.b16 %v776, %v774
    %v803 = vpack.c.b16 %v777, %v775
    %v804 = vpack.c.b16 %v780, %v778
    %v805 = vpack.c.b16 %v781, %v779
    %v806 = vpack.c.b16 %v784, %v782
    %v807 = vpack.c.b16 %v785, %v783
    %v808 = vpack.c.b16 %v788, %v786
    %v809 = vpack.c.b16 %v789, %v787
    %v810 = vpack.c.b16 %v792, %v790
    %v811 = vpack.c.b16 %v793, %v791
    %v812 = vpack.c.b16 %v796, %v794
    %v813 = vpack.c.b16 %v797, %v795
    %830 = vmatpush.bf16.msra.mxu0 %v812
    %831 = vmatpush.bf16.msra.mxu0 %v810
    %832 = vmatpush.bf16.msra.mxu0 %v808
    %833 = vmatpush.bf16.msra.mxu0 %v806
    %834 = vmatpush.bf16.msra.mxu0 %v804
    %835 = vmatpush.bf16.msra.mxu0 %v802
    %836 = vmatpush.bf16.msra.mxu0 %v800
    %837 = vmatpush.bf16.msra.mxu0 %v798
    %838 = vmatmul.bf16.gmra.mxu0 %v726
    %v839 = vpop.f32.mrf.mxu0
    %v840 = vadd.f32 %v748, %v839
    %v841 = vpop.f32.mrf.mxu0
    %v842 = vadd.f32 %v748, %v841
    %843 = vdwg.mxu0
    %844 = vmatpush.bf16.msra.mxu0 %v813
    %845 = vmatpush.bf16.msra.mxu0 %v811
    %846 = vmatpush.bf16.msra.mxu0 %v809
    %847 = vmatpush.bf16.msra.mxu0 %v807
    %848 = vmatpush.bf16.msra.mxu0 %v805
    %849 = vmatpush.bf16.msra.mxu0 %v803
    %850 = vmatpush.bf16.msra.mxu0 %v801
    %851 = vmatpush.bf16.msra.mxu0 %v799
    %852 = vmatmul.bf16.gmra.mxu0 %v726
    %v853 = vpop.f32.mrf.mxu0
    %v854 = vadd.f32 %v749, %v853
    %v855 = vpop.f32.mrf.mxu0
    %v856 = vadd.f32 %v749, %v855
    %857 = vdwg.mxu0
    %v858 = vsub.f32 0.0, %v854
    %v859 = vsub.f32 0.0, %v856
    %v860 = vmul.f32 %v858, 1.442695
    %v861 = vpow.pop %v860
    %v862 = vmul.f32 %v859, 1.442695
    %v863 = vpow.pop %v862
    %v864 = vadd.f32 %v861, 1.0
    %v865 = vadd.f32 %v863, 1.0
    %v866 = vrcp.pop %v864
    %v867 = vrcp.pop %v865
    %v868 = vmul.f32 %v840, %v866
    %v869 = vmul.f32 %v842, %v867
    %v870 = vperm.slane %v725, 1
    %v871 = vadd.f32 %v868, %v870
    %v872 = vadd.f32 %v869, %v870
    %873 = vst [vmem:[#allocation16] sm:$0xff] %v871
    %874 = vst [vmem:[#allocation16 + $0x8] sm:$0xff] %v872
    // Predicated region
    $region70: #{tpu_custom_call.1} parent=1 // pred_check
      _
    $region71: #{tpu_custom_call.1} parent=1 // pred_check_branch
      %876 = sbr.rel (0) target = $region73
    $region72: #{tpu_custom_call.1} parent=1 // pred_region
      %878 = vsyncadd [#allocation4], 0
      %s879 = sshll.u32 [#allocation16], 4
      %s880 = int_to_ptr.vmem [resolvable:$true] %s879
      %s881 = sshll.u32 %s9, 4
      %s882 = int_to_ptr.hbm [resolvable:$true] %s881
      %887 = dma.vmem_to_hbm [thread:$0]  %s880, 256, %s882, [#allocation4], 128, 128, 8
    $region73: #{tpu_custom_call.1} parent=1 // pred_fallthru
      _
    // Predicated region
    $region74: #{tpu_custom_call.1} parent=1 // pred_check
      _
    $region75: #{tpu_custom_call.1} parent=1 // pred_check_branch
      %889 = sbr.rel (0) target = $region77
    $region76: #{tpu_custom_call.1} parent=1 // pred_region
      %891 = dma.done [#allocation4], 256
    $region77: #{tpu_custom_call.1} parent=1 // pred_fallthru
      _
    %892 = vsyncpa [#allocation3], 1
    %893 = vsyncpa [#allocation6], 1
    %894 = vsyncpa [#allocation9], 1
    %895 = vsyncpa [#allocation12], 1
    %896 = vsyncpa [#allocation15], 1
    %897 = vsyncpa [#allocation4], 1

</llo_original>
